<compile_context>
chip_gen: v5e
topology: v5e:2x2
jax: 0.10.0
libtpu: 0.0.40
codegen_flags: <defaults>
</compile_context>

<pallas_src>
import functools

import jax
import jax.numpy as jnp
from jax.experimental import pallas as pl
from jax.experimental.pallas import tpu as pltpu

CONFIG = dict(
    d_model=32,
    nhead=4,
    dim_feedforward=64,
    dropout=0.0,          # identity at inference
    num_layers=2,
    do_pos_embed=True,
    pooling="average",
)

LN_EPS = 1e-5  # torch.nn.LayerNorm default


def _layernorm(x, gamma, beta):
    mu = jnp.mean(x, axis=-1, keepdims=True)
    xc = x - mu
    var = jnp.mean(xc * xc, axis=-1, keepdims=True)
    return xc * jax.lax.rsqrt(var + LN_EPS) * gamma + beta


def _mm(x, w_bf16):
    """2-D matmul: activation cast to bf16, weight already bf16, f32 accumulate (MXU)."""
    return jnp.dot(x.astype(jnp.bfloat16), w_bf16, preferred_element_type=jnp.float32)


# ------------------------------------------------------------------
# Fused kernel: pos-embed + N encoder layers + masked average pooling + Linear(D, 1)
# Single invocation (no grid); everything resident in VMEM.
# ------------------------------------------------------------------
def fused_transformer_kernel(x_ref, pos_ref, mask_q_ref, mask_k_ref,
                             wqkv_ref, bqkv_ref, wo_ref, bo_ref,
                             g1_ref, be1_ref, w1_ref, bf1_ref,
                             w2_ref, bf2_ref, g2_ref, be2_ref,
                             wout_ref, bout_ref,
                             o_ref, ctx_ref, *, nhead):
    B, S, D = x_ref.shape
    H = nhead
    dh = D // H
    L = wqkv_ref.shape[0]

    # Positional embedding add, then flatten batch into sublanes: (B*S, D).
    x2 = (x_ref[...] + pos_ref[...]).reshape(B * S, D)

    # Key-padding mask -> additive bias, hoisted out of the layer/head loops.
    # Must stay f32: in bf16 -1e30 becomes -inf and (-inf)-(-inf)=NaN after max-sub.
    mask_k = mask_k_ref[...]                                   # (B, 1, S): 1 valid
    kbias = (mask_k - 1.0) * 1e30                              # (B, 1, S) f32

    for l in range(L):                                         # unrolled (L = 2)
        # ---- multi-head self-attention ----
        # One QKV projection, one bias add, ONE bf16 cast, one leading-dim reshape.
        # 1/sqrt(dh) is pre-folded into the Q columns of wqkv/bqkv (prepare_kernel_params).
        qkv = _mm(x2, wqkv_ref[l]) + bqkv_ref[l]               # (B*S, 3D) f32
        qkv = qkv.astype(jnp.bfloat16).reshape(B, S, 3 * D)

        # TODO(synk): the H per-head score/PV einsums could be merged into two
        # multi-batch-dim einsums ('bqhd,bkhd->bhqk') once Mosaic dot_general batching
        # over (B, H) is confirmed; kept single-batch-dim einsums for safe lowering.
        for h in range(H):
            q = qkv[:, :, h * dh:(h + 1) * dh]                 # (B, S, dh) bf16, pre-scaled
            k = qkv[:, :, D + h * dh:D + (h + 1) * dh]
            v = qkv[:, :, 2 * D + h * dh:2 * D + (h + 1) * dh]

            s = jnp.einsum("bqd,bkd->bqk", q, k,
                           preferred_element_type=jnp.float32) + kbias  # (B,S,S) f32
            s = s - jnp.max(s, axis=-1, keepdims=True)
            p = jnp.exp(s)
            p = p * pl.reciprocal(jnp.sum(p, axis=-1, keepdims=True), approx=True)

            oh = jnp.einsum("bqk,bkd->bqd", p.astype(jnp.bfloat16), v,
                            preferred_element_type=jnp.float32)         # (B,S,dh) f32
            # Stage heads side-by-side in VMEM so the output projection is ONE
            # (B*S, D) @ (D, D) matmul instead of H tiny folded matmuls.
            ctx_ref[:, h * dh:(h + 1) * dh] = oh.reshape(B * S, dh)

        attn = _mm(ctx_ref[...], wo_ref[l]) + bo_ref[l]        # (B*S, D)

        # residual + LayerNorm1
        h1 = _layernorm(x2 + attn, g1_ref[l], be1_ref[l])

        # ---- feed-forward: linear2(relu(linear1(x))) ----
        ff = jnp.maximum(_mm(h1, w1_ref[l]) + bf1_ref[l], 0.0)
        ff = _mm(ff, w2_ref[l]) + bf2_ref[l]

        # residual + LayerNorm2
        x2 = _layernorm(h1 + ff, g2_ref[l], be2_ref[l])

    # ---- masked average pooling in f32 on the VPU/XLU (no MXU, no bf16 quantization) ----
    y3 = x2.reshape(B, S, D)
    mask_q = mask_q_ref[...]                                   # (B, S, 1): 1 valid
    num = jnp.sum(y3 * mask_q, axis=1, keepdims=True)          # (B, 1, D)
    den = jnp.maximum(jnp.sum(mask_q, axis=1, keepdims=True), 1.0)   # (B, 1, 1)
    pooled = num * pl.reciprocal(den, approx=True)             # (B, 1, D)

    # final Linear(D, 1): lane-reduce against the (1, D) weight row on the VPU/XLU.
    logit = jnp.sum(pooled * wout_ref[...], axis=-1) + bout_ref[...]  # (B, 1)
    # NOTE: (B,1) store is a masked 1-lane vst; fine at B=2 (use lane-dense (1,B) if B grows).
    o_ref[...] = logit


# ------------------------------------------------------------------
# Forward pass wrapper: one pallas_call for the entire model.
# ------------------------------------------------------------------
def classifier_transformer_forward(inp, mask, kparams):
    B, S, D = inp.shape
    x = inp.astype(jnp.float32)
    if CONFIG["do_pos_embed"]:
        pos = kparams["pos_emb"][:S].reshape(1, S, 1).astype(jnp.float32)
    else:
        pos = jnp.zeros((1, S, 1), jnp.float32)
    maskf = mask.astype(jnp.float32)
    mask_q = maskf.reshape(B, S, 1)       # pooling mask
    mask_k = maskf.reshape(B, 1, S)       # key-padding mask

    kernel = functools.partial(fused_transformer_kernel, nhead=CONFIG["nhead"])
    out = pl.pallas_call(
        kernel,
        out_shape=jax.ShapeDtypeStruct((B, 1), jnp.float32),
        scratch_shapes=[pltpu.VMEM((B * S, D), jnp.float32)],   # per-layer attention ctx
        compiler_params=pltpu.CompilerParams(vmem_limit_bytes=8 * 1024 * 1024),
    )(x, pos, mask_q, mask_k, *kparams["layers"], kparams["w_out"], kparams["b_out"])
    return out[:, 0]                                            # squeeze(1)


# ------------------------------------------------------------------
# Deterministic parameter init (synthetic; not a checkpoint load).
# Per-layer parameters are stacked along a leading layer axis (f32 "math" params).
# ------------------------------------------------------------------
def init_params(key):
    D, F, L = CONFIG["d_model"], CONFIG["dim_feedforward"], CONFIG["num_layers"]
    k_pos, k_head, *k_layers = jax.random.split(key, 2 + L)
    params = {"pos_emb": jax.random.normal(k_pos, (500,), jnp.float32) * 0.02}

    per_layer = []
    for kl in k_layers:
        k = jax.random.split(kl, 8)
        s = 1.0 / (D ** 0.5)
        per_layer.append((
            jax.random.normal(k[0], (D, 3 * D), jnp.float32) * s,              # wqkv
            jax.random.normal(k[1], (1, 3 * D), jnp.float32) * 0.01,           # bqkv
            jax.random.normal(k[2], (D, D), jnp.float32) * s,                  # wo
            jax.random.normal(k[3], (1, D), jnp.float32) * 0.01,               # bo
            jnp.ones((1, D), jnp.float32), jnp.zeros((1, D), jnp.float32),     # ln1
            jax.random.normal(k[4], (D, F), jnp.float32) * s,                  # w1
            jax.random.normal(k[5], (1, F), jnp.float32) * 0.01,               # bf1
            jax.random.normal(k[6], (F, D), jnp.float32) * (1.0 / F ** 0.5),   # w2
            jax.random.normal(k[7], (1, D), jnp.float32) * 0.01,               # bf2
            jnp.ones((1, D), jnp.float32), jnp.zeros((1, D), jnp.float32),     # ln2
        ))
    # stack each parameter across layers -> 12 arrays of shape (L, ...)
    params["layers"] = tuple(jnp.stack(ps, axis=0) for ps in zip(*per_layer))

    k1, k2 = jax.random.split(k_head)
    params["w_out"] = jax.random.normal(k1, (1, D), jnp.float32) * (1.0 / D ** 0.5)
    params["b_out"] = jax.random.normal(k2, (1, 1), jnp.float32) * 0.01
    return params


def prepare_kernel_params(params):
    """One-time static transform of f32 math params into kernel format:
      * fold the softmax 1/sqrt(dh) into the Q columns of wqkv and bqkv,
      * pre-cast matmul weights (wqkv, wo, w1, w2) to bf16.
    Biases, LayerNorm params and the tiny output head stay f32."""
    D = CONFIG["d_model"]
    dh = D // CONFIG["nhead"]
    scale = 1.0 / (dh ** 0.5)
    (wqkv, bqkv, wo, bo, g1, be1, w1, bf1, w2, bf2, g2, be2) = params["layers"]
    col_scale = jnp.concatenate(
        [jnp.full((D,), scale, jnp.float32), jnp.ones((2 * D,), jnp.float32)])
    layers = (
        (wqkv * col_scale).astype(jnp.bfloat16),   # wqkv (L, D, 3D), Q cols pre-scaled
        bqkv * col_scale,                          # bqkv (L, 1, 3D) f32, Q cols pre-scaled
        wo.astype(jnp.bfloat16), bo,
        g1, be1,
        w1.astype(jnp.bfloat16), bf1,
        w2.astype(jnp.bfloat16), bf2,
        g2, be2,
    )
    return dict(pos_emb=params["pos_emb"], layers=layers,
                w_out=params["w_out"], b_out=params["b_out"])


# ------------------------------------------------------------------
# Pure-JAX reference (same f32 math weights) for correctness check
# ------------------------------------------------------------------
def reference_forward(inp, mask, params):
    B, S, D = inp.shape
    H = CONFIG["nhead"]
    dh = D // H
    x = inp + params["pos_emb"][:S].reshape(1, S, 1)
    mf = mask.astype(jnp.float32)
    (wqkv, bqkv, wo, bo, g1, be1, w1, bf1, w2, bf2, g2, be2) = params["layers"]
    for l in range(CONFIG["num_layers"]):
        qkv = x @ wqkv[l] + bqkv[l]
        q, k, v = jnp.split(qkv, 3, axis=-1)
        q = q.reshape(B, S, H, dh).transpose(0, 2, 1, 3)
        k = k.reshape(B, S, H, dh).transpose(0, 2, 1, 3)
        v = v.reshape(B, S, H, dh).transpose(0, 2, 1, 3)
        s = jnp.einsum("bhqd,bhkd->bhqk", q, k) / (dh ** 0.5)
        s = jnp.where(mf[:, None, None, :] > 0.5, s, -1e30)
        p = jax.nn.softmax(s, axis=-1)
        attn = jnp.einsum("bhqk,bhkd->bhqd", p, v).transpose(0, 2, 1, 3).reshape(B, S, D)
        attn = attn @ wo[l] + bo[l]
        x = _layernorm(x + attn, g1[l], be1[l])
        ff = jax.nn.relu(x @ w1[l] + bf1[l]) @ w2[l] + bf2[l]
        x = _layernorm(x + ff, g2[l], be2[l])
    pooled = jnp.sum(x * mf[:, :, None], axis=1) / jnp.sum(mf, axis=1, keepdims=True)
    out = pooled @ params["w_out"].T + params["b_out"]
    return out[:, 0]


if __name__ == "__main__":
    key = jax.random.PRNGKey(0)
    k_params, k_inp = jax.random.split(key)
    params = init_params(k_params)
    kparams = prepare_kernel_params(params)

    B, S, D = 2, 8, CONFIG["d_model"]
    inp = jax.random.normal(k_inp, (B, S, D), jnp.float32)
    lengths = jnp.array([8, 5], jnp.int32)
    mask = (jnp.arange(S)[None, :] < lengths[:, None])   # (B, S) bool, True = valid

    fwd = jax.jit(classifier_transformer_forward)
    out = jax.block_until_ready(fwd(inp, mask, kparams))

    ref = reference_forward(inp, mask, params)
    assert out.shape == (B,)
    assert bool(jnp.all(jnp.isfinite(out)))
    # bf16 weights / bf16-operand matmuls + approx reciprocals vs f32 reference.
    assert jnp.allclose(out, ref, rtol=2e-2, atol=2e-2), (out, ref)
    print("KERNEL_OK")
</pallas_src>

<mosaic_0001>
module attributes {stable_mosaic.version = 11 : i64} {
  func.func @fused_transformer_kernel(%arg0: memref<2x8x32xf32, #tpu.memory_space<vmem>>, %arg1: memref<1x8x1xf32, #tpu.memory_space<vmem>>, %arg2: memref<2x8x1xf32, #tpu.memory_space<vmem>>, %arg3: memref<2x1x8xf32, #tpu.memory_space<vmem>>, %arg4: memref<2x32x96xbf16, #tpu.memory_space<vmem>>, %arg5: memref<2x1x96xf32, #tpu.memory_space<vmem>>, %arg6: memref<2x32x32xbf16, #tpu.memory_space<vmem>>, %arg7: memref<2x1x32xf32, #tpu.memory_space<vmem>>, %arg8: memref<2x1x32xf32, #tpu.memory_space<vmem>>, %arg9: memref<2x1x32xf32, #tpu.memory_space<vmem>>, %arg10: memref<2x32x64xbf16, #tpu.memory_space<vmem>>, %arg11: memref<2x1x64xf32, #tpu.memory_space<vmem>>, %arg12: memref<2x64x32xbf16, #tpu.memory_space<vmem>>, %arg13: memref<2x1x32xf32, #tpu.memory_space<vmem>>, %arg14: memref<2x1x32xf32, #tpu.memory_space<vmem>>, %arg15: memref<2x1x32xf32, #tpu.memory_space<vmem>>, %arg16: memref<1x32xf32, #tpu.memory_space<vmem>>, %arg17: memref<1x1xf32, #tpu.memory_space<vmem>>, %arg18: memref<2x1xf32, #tpu.memory_space<vmem>>, %arg19: memref<16x32xf32, #tpu.memory_space<vmem>>) attributes {dimension_semantics = [], scalar_prefetch = 0 : i64, scratch_operands = 1 : i64, tpu.core_type = #tpu.core_type<tc>} {
    %c0 = arith.constant 0 : index
    %c0_0 = arith.constant 0 : index
    %c0_1 = arith.constant 0 : index
    %0 = vector.load %arg0[%c0, %c0_0, %c0_1] : memref<2x8x32xf32, #tpu.memory_space<vmem>>, vector<2x8x32xf32>
    %c0_2 = arith.constant 0 : index
    %c0_3 = arith.constant 0 : index
    %c0_4 = arith.constant 0 : index
    %1 = vector.load %arg1[%c0_2, %c0_3, %c0_4] : memref<1x8x1xf32, #tpu.memory_space<vmem>>, vector<1x8x1xf32>
    %2 = vector.broadcast %1 : vector<1x8x1xf32> to vector<2x8x32xf32>
    %3 = arith.addf %0, %2 : vector<2x8x32xf32>
    %4 = vector.shape_cast %3 : vector<2x8x32xf32> to vector<16x32xf32>
    %c0_5 = arith.constant 0 : index
    %c0_6 = arith.constant 0 : index
    %c0_7 = arith.constant 0 : index
    %5 = vector.load %arg3[%c0_5, %c0_6, %c0_7] : memref<2x1x8xf32, #tpu.memory_space<vmem>>, vector<2x1x8xf32>
    %cst = arith.constant 1.000000e+00 : f32
    %6 = vector.broadcast %cst : f32 to vector<2x1x8xf32>
    %7 = arith.subf %5, %6 : vector<2x1x8xf32>
    %cst_8 = arith.constant 1.000000e+30 : f32
    %8 = vector.broadcast %cst_8 : f32 to vector<2x1x8xf32>
    %9 = arith.mulf %7, %8 : vector<2x1x8xf32>
    %c0_9 = arith.constant 0 : index
    %c0_10 = arith.constant 0 : index
    %c0_11 = arith.constant 0 : index
    %10 = vector.load %arg4[%c0_9, %c0_10, %c0_11] : memref<2x32x96xbf16, #tpu.memory_space<vmem>>, vector<1x32x96xbf16>
    %11 = vector.shape_cast %10 : vector<1x32x96xbf16> to vector<32x96xbf16>
    %12 = arith.truncf %4 : vector<16x32xf32> to vector<16x32xbf16>
    %cst_12 = arith.constant dense<0.000000e+00> : vector<16x96xf32>
    %13 = tpu.matmul %12, %11, %cst_12 {dimension_numbers = #tpu.dot_dimension_numbers<[1], [0], [0], [1], [0, 0, 1, 1], [], []>} : vector<16x32xbf16>, vector<32x96xbf16>, vector<16x96xf32> -> vector<16x96xf32>
    %c0_13 = arith.constant 0 : index
    %c0_14 = arith.constant 0 : index
    %c0_15 = arith.constant 0 : index
    %14 = vector.load %arg5[%c0_13, %c0_14, %c0_15] : memref<2x1x96xf32, #tpu.memory_space<vmem>>, vector<1x1x96xf32>
    %15 = vector.shape_cast %14 : vector<1x1x96xf32> to vector<1x96xf32>
    %16 = vector.broadcast %15 : vector<1x96xf32> to vector<16x96xf32>
    %17 = arith.addf %13, %16 : vector<16x96xf32>
    %18 = arith.truncf %17 : vector<16x96xf32> to vector<16x96xbf16>
    %19 = vector.shape_cast %18 : vector<16x96xbf16> to vector<2x8x96xbf16>
    %20 = vector.extract_strided_slice %19 {offsets = [0, 0, 0], sizes = [2, 8, 8], strides = [1, 1, 1]} : vector<2x8x96xbf16> to vector<2x8x8xbf16>
    %21 = vector.extract_strided_slice %19 {offsets = [0, 0, 32], sizes = [2, 8, 8], strides = [1, 1, 1]} : vector<2x8x96xbf16> to vector<2x8x8xbf16>
    %22 = vector.extract_strided_slice %19 {offsets = [0, 0, 64], sizes = [2, 8, 8], strides = [1, 1, 1]} : vector<2x8x96xbf16> to vector<2x8x8xbf16>
    "tpu.trace_start"() <{level = 10 : i32, message = "bqd,bkd->bqk"}> : () -> ()
    %cst_16 = arith.constant dense<0.000000e+00> : vector<2x8x8xf32>
    %23 = tpu.matmul %20, %21, %cst_16 {dimension_numbers = #tpu.dot_dimension_numbers<[2], [2], [1], [1], [0, 0, 0, 1, 1, 1], [0], [0]>} : vector<2x8x8xbf16>, vector<2x8x8xbf16>, vector<2x8x8xf32> -> vector<2x8x8xf32>
    "tpu.trace_stop"() : () -> ()
    %24 = vector.broadcast %9 : vector<2x1x8xf32> to vector<2x8x8xf32>
    %25 = arith.addf %23, %24 : vector<2x8x8xf32>
    %cst_17 = arith.constant dense<0xFF800000> : vector<2x8xf32>
    %26 = vector.multi_reduction <maximumf>, %25, %cst_17 [2] : vector<2x8x8xf32> to vector<2x8xf32>
    %27 = vector.shape_cast %26 : vector<2x8xf32> to vector<2x8x1xf32>
    %28 = vector.broadcast %27 : vector<2x8x1xf32> to vector<2x8x8xf32>
    %29 = arith.subf %25, %28 : vector<2x8x8xf32>
    %30 = math.exp %29 : vector<2x8x8xf32>
    %cst_18 = arith.constant dense<0.000000e+00> : vector<2x8xf32>
    %31 = vector.multi_reduction <add>, %30, %cst_18 [2] : vector<2x8x8xf32> to vector<2x8xf32>
    %32 = vector.shape_cast %31 : vector<2x8xf32> to vector<2x8x1xf32>
    %33 = tpu.reciprocal %32 {approx = true} : vector<2x8x1xf32> -> vector<2x8x1xf32>
    %34 = vector.broadcast %33 : vector<2x8x1xf32> to vector<2x8x8xf32>
    %35 = arith.mulf %30, %34 : vector<2x8x8xf32>
    %36 = arith.truncf %35 : vector<2x8x8xf32> to vector<2x8x8xbf16>
    "tpu.trace_start"() <{level = 10 : i32, message = "bqk,bkd->bqd"}> : () -> ()
    %cst_19 = arith.constant dense<0.000000e+00> : vector<2x8x8xf32>
    %37 = tpu.matmul %36, %22, %cst_19 {dimension_numbers = #tpu.dot_dimension_numbers<[2], [1], [1], [2], [0, 0, 0, 1, 1, 2], [0], [0]>} : vector<2x8x8xbf16>, vector<2x8x8xbf16>, vector<2x8x8xf32> -> vector<2x8x8xf32>
    "tpu.trace_stop"() : () -> ()
    %38 = vector.shape_cast %37 : vector<2x8x8xf32> to vector<16x8xf32>
    %c0_20 = arith.constant 0 : index
    %c0_21 = arith.constant 0 : index
    %39 = vector.load %arg19[%c0_20, %c0_21] : memref<16x32xf32, #tpu.memory_space<vmem>>, vector<16x8xf32>
    tpu.vector_store %arg19[%c0_20, %c0_21], %38 {strides = array<i32>} : memref<16x32xf32, #tpu.memory_space<vmem>>, vector<16x8xf32>,
    %40 = vector.extract_strided_slice %19 {offsets = [0, 0, 8], sizes = [2, 8, 8], strides = [1, 1, 1]} : vector<2x8x96xbf16> to vector<2x8x8xbf16>
    %41 = vector.extract_strided_slice %19 {offsets = [0, 0, 40], sizes = [2, 8, 8], strides = [1, 1, 1]} : vector<2x8x96xbf16> to vector<2x8x8xbf16>
    %42 = vector.extract_strided_slice %19 {offsets = [0, 0, 72], sizes = [2, 8, 8], strides = [1, 1, 1]} : vector<2x8x96xbf16> to vector<2x8x8xbf16>
    "tpu.trace_start"() <{level = 10 : i32, message = "bqd,bkd->bqk"}> : () -> ()
    %cst_22 = arith.constant dense<0.000000e+00> : vector<2x8x8xf32>
    %43 = tpu.matmul %40, %41, %cst_22 {dimension_numbers = #tpu.dot_dimension_numbers<[2], [2], [1], [1], [0, 0, 0, 1, 1, 1], [0], [0]>} : vector<2x8x8xbf16>, vector<2x8x8xbf16>, vector<2x8x8xf32> -> vector<2x8x8xf32>
    "tpu.trace_stop"() : () -> ()
    %44 = vector.broadcast %9 : vector<2x1x8xf32> to vector<2x8x8xf32>
    %45 = arith.addf %43, %44 : vector<2x8x8xf32>
    %cst_23 = arith.constant dense<0xFF800000> : vector<2x8xf32>
    %46 = vector.multi_reduction <maximumf>, %45, %cst_23 [2] : vector<2x8x8xf32> to vector<2x8xf32>
    %47 = vector.shape_cast %46 : vector<2x8xf32> to vector<2x8x1xf32>
    %48 = vector.broadcast %47 : vector<2x8x1xf32> to vector<2x8x8xf32>
    %49 = arith.subf %45, %48 : vector<2x8x8xf32>
    %50 = math.exp %49 : vector<2x8x8xf32>
    %cst_24 = arith.constant dense<0.000000e+00> : vector<2x8xf32>
    %51 = vector.multi_reduction <add>, %50, %cst_24 [2] : vector<2x8x8xf32> to vector<2x8xf32>
    %52 = vector.shape_cast %51 : vector<2x8xf32> to vector<2x8x1xf32>
    %53 = tpu.reciprocal %52 {approx = true} : vector<2x8x1xf32> -> vector<2x8x1xf32>
    %54 = vector.broadcast %53 : vector<2x8x1xf32> to vector<2x8x8xf32>
    %55 = arith.mulf %50, %54 : vector<2x8x8xf32>
    %56 = arith.truncf %55 : vector<2x8x8xf32> to vector<2x8x8xbf16>
    "tpu.trace_start"() <{level = 10 : i32, message = "bqk,bkd->bqd"}> : () -> ()
    %cst_25 = arith.constant dense<0.000000e+00> : vector<2x8x8xf32>
    %57 = tpu.matmul %56, %42, %cst_25 {dimension_numbers = #tpu.dot_dimension_numbers<[2], [1], [1], [2], [0, 0, 0, 1, 1, 2], [0], [0]>} : vector<2x8x8xbf16>, vector<2x8x8xbf16>, vector<2x8x8xf32> -> vector<2x8x8xf32>
    "tpu.trace_stop"() : () -> ()
    %58 = vector.shape_cast %57 : vector<2x8x8xf32> to vector<16x8xf32>
    %c0_26 = arith.constant 0 : index
    %c8 = arith.constant 8 : index
    %59 = vector.load %arg19[%c0_26, %c8] : memref<16x32xf32, #tpu.memory_space<vmem>>, vector<16x8xf32>
    tpu.vector_store %arg19[%c0_26, %c8], %58 {strides = array<i32>} : memref<16x32xf32, #tpu.memory_space<vmem>>, vector<16x8xf32>,
    %60 = vector.extract_strided_slice %19 {offsets = [0, 0, 16], sizes = [2, 8, 8], strides = [1, 1, 1]} : vector<2x8x96xbf16> to vector<2x8x8xbf16>
    %61 = vector.extract_strided_slice %19 {offsets = [0, 0, 48], sizes = [2, 8, 8], strides = [1, 1, 1]} : vector<2x8x96xbf16> to vector<2x8x8xbf16>
    %62 = vector.extract_strided_slice %19 {offsets = [0, 0, 80], sizes = [2, 8, 8], strides = [1, 1, 1]} : vector<2x8x96xbf16> to vector<2x8x8xbf16>
    "tpu.trace_start"() <{level = 10 : i32, message = "bqd,bkd->bqk"}> : () -> ()
    %cst_27 = arith.constant dense<0.000000e+00> : vector<2x8x8xf32>
    %63 = tpu.matmul %60, %61, %cst_27 {dimension_numbers = #tpu.dot_dimension_numbers<[2], [2], [1], [1], [0, 0, 0, 1, 1, 1], [0], [0]>} : vector<2x8x8xbf16>, vector<2x8x8xbf16>, vector<2x8x8xf32> -> vector<2x8x8xf32>
    "tpu.trace_stop"() : () -> ()
    %64 = vector.broadcast %9 : vector<2x1x8xf32> to vector<2x8x8xf32>
    %65 = arith.addf %63, %64 : vector<2x8x8xf32>
    %cst_28 = arith.constant dense<0xFF800000> : vector<2x8xf32>
    %66 = vector.multi_reduction <maximumf>, %65, %cst_28 [2] : vector<2x8x8xf32> to vector<2x8xf32>
    %67 = vector.shape_cast %66 : vector<2x8xf32> to vector<2x8x1xf32>
    %68 = vector.broadcast %67 : vector<2x8x1xf32> to vector<2x8x8xf32>
    %69 = arith.subf %65, %68 : vector<2x8x8xf32>
    %70 = math.exp %69 : vector<2x8x8xf32>
    %cst_29 = arith.constant dense<0.000000e+00> : vector<2x8xf32>
    %71 = vector.multi_reduction <add>, %70, %cst_29 [2] : vector<2x8x8xf32> to vector<2x8xf32>
    %72 = vector.shape_cast %71 : vector<2x8xf32> to vector<2x8x1xf32>
    %73 = tpu.reciprocal %72 {approx = true} : vector<2x8x1xf32> -> vector<2x8x1xf32>
    %74 = vector.broadcast %73 : vector<2x8x1xf32> to vector<2x8x8xf32>
    %75 = arith.mulf %70, %74 : vector<2x8x8xf32>
    %76 = arith.truncf %75 : vector<2x8x8xf32> to vector<2x8x8xbf16>
    "tpu.trace_start"() <{level = 10 : i32, message = "bqk,bkd->bqd"}> : () -> ()
    %cst_30 = arith.constant dense<0.000000e+00> : vector<2x8x8xf32>
    %77 = tpu.matmul %76, %62, %cst_30 {dimension_numbers = #tpu.dot_dimension_numbers<[2], [1], [1], [2], [0, 0, 0, 1, 1, 2], [0], [0]>} : vector<2x8x8xbf16>, vector<2x8x8xbf16>, vector<2x8x8xf32> -> vector<2x8x8xf32>
    "tpu.trace_stop"() : () -> ()
    %78 = vector.shape_cast %77 : vector<2x8x8xf32> to vector<16x8xf32>
    %c0_31 = arith.constant 0 : index
    %c16 = arith.constant 16 : index
    %79 = vector.load %arg19[%c0_31, %c16] : memref<16x32xf32, #tpu.memory_space<vmem>>, vector<16x8xf32>
    tpu.vector_store %arg19[%c0_31, %c16], %78 {strides = array<i32>} : memref<16x32xf32, #tpu.memory_space<vmem>>, vector<16x8xf32>,
    %80 = vector.extract_strided_slice %19 {offsets = [0, 0, 24], sizes = [2, 8, 8], strides = [1, 1, 1]} : vector<2x8x96xbf16> to vector<2x8x8xbf16>
    %81 = vector.extract_strided_slice %19 {offsets = [0, 0, 56], sizes = [2, 8, 8], strides = [1, 1, 1]} : vector<2x8x96xbf16> to vector<2x8x8xbf16>
    %82 = vector.extract_strided_slice %19 {offsets = [0, 0, 88], sizes = [2, 8, 8], strides = [1, 1, 1]} : vector<2x8x96xbf16> to vector<2x8x8xbf16>
    "tpu.trace_start"() <{level = 10 : i32, message = "bqd,bkd->bqk"}> : () -> ()
    %cst_32 = arith.constant dense<0.000000e+00> : vector<2x8x8xf32>
    %83 = tpu.matmul %80, %81, %cst_32 {dimension_numbers = #tpu.dot_dimension_numbers<[2], [2], [1], [1], [0, 0, 0, 1, 1, 1], [0], [0]>} : vector<2x8x8xbf16>, vector<2x8x8xbf16>, vector<2x8x8xf32> -> vector<2x8x8xf32>
    "tpu.trace_stop"() : () -> ()
    %84 = vector.broadcast %9 : vector<2x1x8xf32> to vector<2x8x8xf32>
    %85 = arith.addf %83, %84 : vector<2x8x8xf32>
    %cst_33 = arith.constant dense<0xFF800000> : vector<2x8xf32>
    %86 = vector.multi_reduction <maximumf>, %85, %cst_33 [2] : vector<2x8x8xf32> to vector<2x8xf32>
    %87 = vector.shape_cast %86 : vector<2x8xf32> to vector<2x8x1xf32>
    %88 = vector.broadcast %87 : vector<2x8x1xf32> to vector<2x8x8xf32>
    %89 = arith.subf %85, %88 : vector<2x8x8xf32>
    %90 = math.exp %89 : vector<2x8x8xf32>
    %cst_34 = arith.constant dense<0.000000e+00> : vector<2x8xf32>
    %91 = vector.multi_reduction <add>, %90, %cst_34 [2] : vector<2x8x8xf32> to vector<2x8xf32>
    %92 = vector.shape_cast %91 : vector<2x8xf32> to vector<2x8x1xf32>
    %93 = tpu.reciprocal %92 {approx = true} : vector<2x8x1xf32> -> vector<2x8x1xf32>
    %94 = vector.broadcast %93 : vector<2x8x1xf32> to vector<2x8x8xf32>
    %95 = arith.mulf %90, %94 : vector<2x8x8xf32>
    %96 = arith.truncf %95 : vector<2x8x8xf32> to vector<2x8x8xbf16>
    "tpu.trace_start"() <{level = 10 : i32, message = "bqk,bkd->bqd"}> : () -> ()
    %cst_35 = arith.constant dense<0.000000e+00> : vector<2x8x8xf32>
    %97 = tpu.matmul %96, %82, %cst_35 {dimension_numbers = #tpu.dot_dimension_numbers<[2], [1], [1], [2], [0, 0, 0, 1, 1, 2], [0], [0]>} : vector<2x8x8xbf16>, vector<2x8x8xbf16>, vector<2x8x8xf32> -> vector<2x8x8xf32>
    "tpu.trace_stop"() : () -> ()
    %98 = vector.shape_cast %97 : vector<2x8x8xf32> to vector<16x8xf32>
    %c0_36 = arith.constant 0 : index
    %c24 = arith.constant 24 : index
    %99 = vector.load %arg19[%c0_36, %c24] : memref<16x32xf32, #tpu.memory_space<vmem>>, vector<16x8xf32>
    tpu.vector_store %arg19[%c0_36, %c24], %98 {strides = array<i32>} : memref<16x32xf32, #tpu.memory_space<vmem>>, vector<16x8xf32>,
    %c0_37 = arith.constant 0 : index
    %c0_38 = arith.constant 0 : index
    %100 = vector.load %arg19[%c0_37, %c0_38] : memref<16x32xf32, #tpu.memory_space<vmem>>, vector<16x32xf32>
    %c0_39 = arith.constant 0 : index
    %c0_40 = arith.constant 0 : index
    %c0_41 = arith.constant 0 : index
    %101 = vector.load %arg6[%c0_39, %c0_40, %c0_41] : memref<2x32x32xbf16, #tpu.memory_space<vmem>>, vector<1x32x32xbf16>
    %102 = vector.shape_cast %101 : vector<1x32x32xbf16> to vector<32x32xbf16>
    %103 = arith.truncf %100 : vector<16x32xf32> to vector<16x32xbf16>
    %cst_42 = arith.constant dense<0.000000e+00> : vector<16x32xf32>
    %104 = tpu.matmul %103, %102, %cst_42 {dimension_numbers = #tpu.dot_dimension_numbers<[1], [0], [0], [1], [0, 0, 1, 1], [], []>} : vector<16x32xbf16>, vector<32x32xbf16>, vector<16x32xf32> -> vector<16x32xf32>
    %c0_43 = arith.constant 0 : index
    %c0_44 = arith.constant 0 : index
    %c0_45 = arith.constant 0 : index
    %105 = vector.load %arg7[%c0_43, %c0_44, %c0_45] : memref<2x1x32xf32, #tpu.memory_space<vmem>>, vector<1x1x32xf32>
    %106 = vector.shape_cast %105 : vector<1x1x32xf32> to vector<1x32xf32>
    %107 = vector.broadcast %106 : vector<1x32xf32> to vector<16x32xf32>
    %108 = arith.addf %104, %107 : vector<16x32xf32>
    %109 = arith.addf %4, %108 : vector<16x32xf32>
    %c0_46 = arith.constant 0 : index
    %c0_47 = arith.constant 0 : index
    %c0_48 = arith.constant 0 : index
    %110 = vector.load %arg8[%c0_46, %c0_47, %c0_48] : memref<2x1x32xf32, #tpu.memory_space<vmem>>, vector<1x1x32xf32>
    %111 = vector.shape_cast %110 : vector<1x1x32xf32> to vector<1x32xf32>
    %c0_49 = arith.constant 0 : index
    %c0_50 = arith.constant 0 : index
    %c0_51 = arith.constant 0 : index
    %112 = vector.load %arg9[%c0_49, %c0_50, %c0_51] : memref<2x1x32xf32, #tpu.memory_space<vmem>>, vector<1x1x32xf32>
    %113 = vector.shape_cast %112 : vector<1x1x32xf32> to vector<1x32xf32>
    %cst_52 = arith.constant dense<0.000000e+00> : vector<16xf32>
    %114 = vector.multi_reduction <add>, %109, %cst_52 [1] : vector<16x32xf32> to vector<16xf32>
    %115 = vector.shape_cast %114 : vector<16xf32> to vector<16x1xf32>
    %cst_53 = arith.constant 3.200000e+01 : f32
    %116 = vector.broadcast %cst_53 : f32 to vector<16x1xf32>
    %117 = arith.divf %115, %116 : vector<16x1xf32>
    %118 = vector.broadcast %117 : vector<16x1xf32> to vector<16x32xf32>
    %119 = arith.subf %109, %118 : vector<16x32xf32>
    %120 = arith.mulf %119, %119 : vector<16x32xf32>
    %cst_54 = arith.constant dense<0.000000e+00> : vector<16xf32>
    %121 = vector.multi_reduction <add>, %120, %cst_54 [1] : vector<16x32xf32> to vector<16xf32>
    %122 = vector.shape_cast %121 : vector<16xf32> to vector<16x1xf32>
    %cst_55 = arith.constant 3.200000e+01 : f32
    %123 = vector.broadcast %cst_55 : f32 to vector<16x1xf32>
    %124 = arith.divf %122, %123 : vector<16x1xf32>
    %cst_56 = arith.constant 9.99999974E-6 : f32
    %125 = vector.broadcast %cst_56 : f32 to vector<16x1xf32>
    %126 = arith.addf %124, %125 : vector<16x1xf32>
    %127 = math.rsqrt %126 : vector<16x1xf32>
    %128 = vector.broadcast %127 : vector<16x1xf32> to vector<16x32xf32>
    %129 = arith.mulf %119, %128 : vector<16x32xf32>
    %130 = vector.broadcast %111 : vector<1x32xf32> to vector<16x32xf32>
    %131 = arith.mulf %129, %130 : vector<16x32xf32>
    %132 = vector.broadcast %113 : vector<1x32xf32> to vector<16x32xf32>
    %133 = arith.addf %131, %132 : vector<16x32xf32>
    %c0_57 = arith.constant 0 : index
    %c0_58 = arith.constant 0 : index
    %c0_59 = arith.constant 0 : index
    %134 = vector.load %arg10[%c0_57, %c0_58, %c0_59] : memref<2x32x64xbf16, #tpu.memory_space<vmem>>, vector<1x32x64xbf16>
    %135 = vector.shape_cast %134 : vector<1x32x64xbf16> to vector<32x64xbf16>
    %136 = arith.truncf %133 : vector<16x32xf32> to vector<16x32xbf16>
    %cst_60 = arith.constant dense<0.000000e+00> : vector<16x64xf32>
    %137 = tpu.matmul %136, %135, %cst_60 {dimension_numbers = #tpu.dot_dimension_numbers<[1], [0], [0], [1], [0, 0, 1, 1], [], []>} : vector<16x32xbf16>, vector<32x64xbf16>, vector<16x64xf32> -> vector<16x64xf32>
    %c0_61 = arith.constant 0 : index
    %c0_62 = arith.constant 0 : index
    %c0_63 = arith.constant 0 : index
    %138 = vector.load %arg11[%c0_61, %c0_62, %c0_63] : memref<2x1x64xf32, #tpu.memory_space<vmem>>, vector<1x1x64xf32>
    %139 = vector.shape_cast %138 : vector<1x1x64xf32> to vector<1x64xf32>
    %140 = vector.broadcast %139 : vector<1x64xf32> to vector<16x64xf32>
    %141 = arith.addf %137, %140 : vector<16x64xf32>
    %cst_64 = arith.constant 0.000000e+00 : f32
    %142 = vector.broadcast %cst_64 : f32 to vector<16x64xf32>
    %143 = arith.maximumf %141, %142 : vector<16x64xf32>
    %c0_65 = arith.constant 0 : index
    %c0_66 = arith.constant 0 : index
    %c0_67 = arith.constant 0 : index
    %144 = vector.load %arg12[%c0_65, %c0_66, %c0_67] : memref<2x64x32xbf16, #tpu.memory_space<vmem>>, vector<1x64x32xbf16>
    %145 = vector.shape_cast %144 : vector<1x64x32xbf16> to vector<64x32xbf16>
    %146 = arith.truncf %143 : vector<16x64xf32> to vector<16x64xbf16>
    %cst_68 = arith.constant dense<0.000000e+00> : vector<16x32xf32>
    %147 = tpu.matmul %146, %145, %cst_68 {dimension_numbers = #tpu.dot_dimension_numbers<[1], [0], [0], [1], [0, 0, 1, 1], [], []>} : vector<16x64xbf16>, vector<64x32xbf16>, vector<16x32xf32> -> vector<16x32xf32>
    %c0_69 = arith.constant 0 : index
    %c0_70 = arith.constant 0 : index
    %c0_71 = arith.constant 0 : index
    %148 = vector.load %arg13[%c0_69, %c0_70, %c0_71] : memref<2x1x32xf32, #tpu.memory_space<vmem>>, vector<1x1x32xf32>
    %149 = vector.shape_cast %148 : vector<1x1x32xf32> to vector<1x32xf32>
    %150 = vector.broadcast %149 : vector<1x32xf32> to vector<16x32xf32>
    %151 = arith.addf %147, %150 : vector<16x32xf32>
    %152 = arith.addf %133, %151 : vector<16x32xf32>
    %c0_72 = arith.constant 0 : index
    %c0_73 = arith.constant 0 : index
    %c0_74 = arith.constant 0 : index
    %153 = vector.load %arg14[%c0_72, %c0_73, %c0_74] : memref<2x1x32xf32, #tpu.memory_space<vmem>>, vector<1x1x32xf32>
    %154 = vector.shape_cast %153 : vector<1x1x32xf32> to vector<1x32xf32>
    %c0_75 = arith.constant 0 : index
    %c0_76 = arith.constant 0 : index
    %c0_77 = arith.constant 0 : index
    %155 = vector.load %arg15[%c0_75, %c0_76, %c0_77] : memref<2x1x32xf32, #tpu.memory_space<vmem>>, vector<1x1x32xf32>
    %156 = vector.shape_cast %155 : vector<1x1x32xf32> to vector<1x32xf32>
    %cst_78 = arith.constant dense<0.000000e+00> : vector<16xf32>
    %157 = vector.multi_reduction <add>, %152, %cst_78 [1] : vector<16x32xf32> to vector<16xf32>
    %158 = vector.shape_cast %157 : vector<16xf32> to vector<16x1xf32>
    %cst_79 = arith.constant 3.200000e+01 : f32
    %159 = vector.broadcast %cst_79 : f32 to vector<16x1xf32>
    %160 = arith.divf %158, %159 : vector<16x1xf32>
    %161 = vector.broadcast %160 : vector<16x1xf32> to vector<16x32xf32>
    %162 = arith.subf %152, %161 : vector<16x32xf32>
    %163 = arith.mulf %162, %162 : vector<16x32xf32>
    %cst_80 = arith.constant dense<0.000000e+00> : vector<16xf32>
    %164 = vector.multi_reduction <add>, %163, %cst_80 [1] : vector<16x32xf32> to vector<16xf32>
    %165 = vector.shape_cast %164 : vector<16xf32> to vector<16x1xf32>
    %cst_81 = arith.constant 3.200000e+01 : f32
    %166 = vector.broadcast %cst_81 : f32 to vector<16x1xf32>
    %167 = arith.divf %165, %166 : vector<16x1xf32>
    %cst_82 = arith.constant 9.99999974E-6 : f32
    %168 = vector.broadcast %cst_82 : f32 to vector<16x1xf32>
    %169 = arith.addf %167, %168 : vector<16x1xf32>
    %170 = math.rsqrt %169 : vector<16x1xf32>
    %171 = vector.broadcast %170 : vector<16x1xf32> to vector<16x32xf32>
    %172 = arith.mulf %162, %171 : vector<16x32xf32>
    %173 = vector.broadcast %154 : vector<1x32xf32> to vector<16x32xf32>
    %174 = arith.mulf %172, %173 : vector<16x32xf32>
    %175 = vector.broadcast %156 : vector<1x32xf32> to vector<16x32xf32>
    %176 = arith.addf %174, %175 : vector<16x32xf32>
    %c1 = arith.constant 1 : index
    %c0_83 = arith.constant 0 : index
    %c0_84 = arith.constant 0 : index
    %177 = vector.load %arg4[%c1, %c0_83, %c0_84] : memref<2x32x96xbf16, #tpu.memory_space<vmem>>, vector<1x32x96xbf16>
    %178 = vector.shape_cast %177 : vector<1x32x96xbf16> to vector<32x96xbf16>
    %179 = arith.truncf %176 : vector<16x32xf32> to vector<16x32xbf16>
    %cst_85 = arith.constant dense<0.000000e+00> : vector<16x96xf32>
    %180 = tpu.matmul %179, %178, %cst_85 {dimension_numbers = #tpu.dot_dimension_numbers<[1], [0], [0], [1], [0, 0, 1, 1], [], []>} : vector<16x32xbf16>, vector<32x96xbf16>, vector<16x96xf32> -> vector<16x96xf32>
    %c1_86 = arith.constant 1 : index
    %c0_87 = arith.constant 0 : index
    %c0_88 = arith.constant 0 : index
    %181 = vector.load %arg5[%c1_86, %c0_87, %c0_88] : memref<2x1x96xf32, #tpu.memory_space<vmem>>, vector<1x1x96xf32>
    %182 = vector.shape_cast %181 : vector<1x1x96xf32> to vector<1x96xf32>
    %183 = vector.broadcast %182 : vector<1x96xf32> to vector<16x96xf32>
    %184 = arith.addf %180, %183 : vector<16x96xf32>
    %185 = arith.truncf %184 : vector<16x96xf32> to vector<16x96xbf16>
    %186 = vector.shape_cast %185 : vector<16x96xbf16> to vector<2x8x96xbf16>
    %187 = vector.extract_strided_slice %186 {offsets = [0, 0, 0], sizes = [2, 8, 8], strides = [1, 1, 1]} : vector<2x8x96xbf16> to vector<2x8x8xbf16>
    %188 = vector.extract_strided_slice %186 {offsets = [0, 0, 32], sizes = [2, 8, 8], strides = [1, 1, 1]} : vector<2x8x96xbf16> to vector<2x8x8xbf16>
    %189 = vector.extract_strided_slice %186 {offsets = [0, 0, 64], sizes = [2, 8, 8], strides = [1, 1, 1]} : vector<2x8x96xbf16> to vector<2x8x8xbf16>
    "tpu.trace_start"() <{level = 10 : i32, message = "bqd,bkd->bqk"}> : () -> ()
    %cst_89 = arith.constant dense<0.000000e+00> : vector<2x8x8xf32>
    %190 = tpu.matmul %187, %188, %cst_89 {dimension_numbers = #tpu.dot_dimension_numbers<[2], [2], [1], [1], [0, 0, 0, 1, 1, 1], [0], [0]>} : vector<2x8x8xbf16>, vector<2x8x8xbf16>, vector<2x8x8xf32> -> vector<2x8x8xf32>
    "tpu.trace_stop"() : () -> ()
    %191 = vector.broadcast %9 : vector<2x1x8xf32> to vector<2x8x8xf32>
    %192 = arith.addf %190, %191 : vector<2x8x8xf32>
    %cst_90 = arith.constant dense<0xFF800000> : vector<2x8xf32>
    %193 = vector.multi_reduction <maximumf>, %192, %cst_90 [2] : vector<2x8x8xf32> to vector<2x8xf32>
    %194 = vector.shape_cast %193 : vector<2x8xf32> to vector<2x8x1xf32>
    %195 = vector.broadcast %194 : vector<2x8x1xf32> to vector<2x8x8xf32>
    %196 = arith.subf %192, %195 : vector<2x8x8xf32>
    %197 = math.exp %196 : vector<2x8x8xf32>
    %cst_91 = arith.constant dense<0.000000e+00> : vector<2x8xf32>
    %198 = vector.multi_reduction <add>, %197, %cst_91 [2] : vector<2x8x8xf32> to vector<2x8xf32>
    %199 = vector.shape_cast %198 : vector<2x8xf32> to vector<2x8x1xf32>
    %200 = tpu.reciprocal %199 {approx = true} : vector<2x8x1xf32> -> vector<2x8x1xf32>
    %201 = vector.broadcast %200 : vector<2x8x1xf32> to vector<2x8x8xf32>
    %202 = arith.mulf %197, %201 : vector<2x8x8xf32>
    %203 = arith.truncf %202 : vector<2x8x8xf32> to vector<2x8x8xbf16>
    "tpu.trace_start"() <{level = 10 : i32, message = "bqk,bkd->bqd"}> : () -> ()
    %cst_92 = arith.constant dense<0.000000e+00> : vector<2x8x8xf32>
    %204 = tpu.matmul %203, %189, %cst_92 {dimension_numbers = #tpu.dot_dimension_numbers<[2], [1], [1], [2], [0, 0, 0, 1, 1, 2], [0], [0]>} : vector<2x8x8xbf16>, vector<2x8x8xbf16>, vector<2x8x8xf32> -> vector<2x8x8xf32>
    "tpu.trace_stop"() : () -> ()
    %205 = vector.shape_cast %204 : vector<2x8x8xf32> to vector<16x8xf32>
    %c0_93 = arith.constant 0 : index
    %c0_94 = arith.constant 0 : index
    %206 = vector.load %arg19[%c0_93, %c0_94] : memref<16x32xf32, #tpu.memory_space<vmem>>, vector<16x8xf32>
    tpu.vector_store %arg19[%c0_93, %c0_94], %205 {strides = array<i32>} : memref<16x32xf32, #tpu.memory_space<vmem>>, vector<16x8xf32>,
    %207 = vector.extract_strided_slice %186 {offsets = [0, 0, 8], sizes = [2, 8, 8], strides = [1, 1, 1]} : vector<2x8x96xbf16> to vector<2x8x8xbf16>
    %208 = vector.extract_strided_slice %186 {offsets = [0, 0, 40], sizes = [2, 8, 8], strides = [1, 1, 1]} : vector<2x8x96xbf16> to vector<2x8x8xbf16>
    %209 = vector.extract_strided_slice %186 {offsets = [0, 0, 72], sizes = [2, 8, 8], strides = [1, 1, 1]} : vector<2x8x96xbf16> to vector<2x8x8xbf16>
    "tpu.trace_start"() <{level = 10 : i32, message = "bqd,bkd->bqk"}> : () -> ()
    %cst_95 = arith.constant dense<0.000000e+00> : vector<2x8x8xf32>
    %210 = tpu.matmul %207, %208, %cst_95 {dimension_numbers = #tpu.dot_dimension_numbers<[2], [2], [1], [1], [0, 0, 0, 1, 1, 1], [0], [0]>} : vector<2x8x8xbf16>, vector<2x8x8xbf16>, vector<2x8x8xf32> -> vector<2x8x8xf32>
    "tpu.trace_stop"() : () -> ()
    %211 = vector.broadcast %9 : vector<2x1x8xf32> to vector<2x8x8xf32>
    %212 = arith.addf %210, %211 : vector<2x8x8xf32>
    %cst_96 = arith.constant dense<0xFF800000> : vector<2x8xf32>
    %213 = vector.multi_reduction <maximumf>, %212, %cst_96 [2] : vector<2x8x8xf32> to vector<2x8xf32>
    %214 = vector.shape_cast %213 : vector<2x8xf32> to vector<2x8x1xf32>
    %215 = vector.broadcast %214 : vector<2x8x1xf32> to vector<2x8x8xf32>
    %216 = arith.subf %212, %215 : vector<2x8x8xf32>
    %217 = math.exp %216 : vector<2x8x8xf32>
    %cst_97 = arith.constant dense<0.000000e+00> : vector<2x8xf32>
    %218 = vector.multi_reduction <add>, %217, %cst_97 [2] : vector<2x8x8xf32> to vector<2x8xf32>
    %219 = vector.shape_cast %218 : vector<2x8xf32> to vector<2x8x1xf32>
    %220 = tpu.reciprocal %219 {approx = true} : vector<2x8x1xf32> -> vector<2x8x1xf32>
    %221 = vector.broadcast %220 : vector<2x8x1xf32> to vector<2x8x8xf32>
    %222 = arith.mulf %217, %221 : vector<2x8x8xf32>
    %223 = arith.truncf %222 : vector<2x8x8xf32> to vector<2x8x8xbf16>
    "tpu.trace_start"() <{level = 10 : i32, message = "bqk,bkd->bqd"}> : () -> ()
    %cst_98 = arith.constant dense<0.000000e+00> : vector<2x8x8xf32>
    %224 = tpu.matmul %223, %209, %cst_98 {dimension_numbers = #tpu.dot_dimension_numbers<[2], [1], [1], [2], [0, 0, 0, 1, 1, 2], [0], [0]>} : vector<2x8x8xbf16>, vector<2x8x8xbf16>, vector<2x8x8xf32> -> vector<2x8x8xf32>
    "tpu.trace_stop"() : () -> ()
    %225 = vector.shape_cast %224 : vector<2x8x8xf32> to vector<16x8xf32>
    %c0_99 = arith.constant 0 : index
    %c8_100 = arith.constant 8 : index
    %226 = vector.load %arg19[%c0_99, %c8_100] : memref<16x32xf32, #tpu.memory_space<vmem>>, vector<16x8xf32>
    tpu.vector_store %arg19[%c0_99, %c8_100], %225 {strides = array<i32>} : memref<16x32xf32, #tpu.memory_space<vmem>>, vector<16x8xf32>,
    %227 = vector.extract_strided_slice %186 {offsets = [0, 0, 16], sizes = [2, 8, 8], strides = [1, 1, 1]} : vector<2x8x96xbf16> to vector<2x8x8xbf16>
    %228 = vector.extract_strided_slice %186 {offsets = [0, 0, 48], sizes = [2, 8, 8], strides = [1, 1, 1]} : vector<2x8x96xbf16> to vector<2x8x8xbf16>
    %229 = vector.extract_strided_slice %186 {offsets = [0, 0, 80], sizes = [2, 8, 8], strides = [1, 1, 1]} : vector<2x8x96xbf16> to vector<2x8x8xbf16>
    "tpu.trace_start"() <{level = 10 : i32, message = "bqd,bkd->bqk"}> : () -> ()
    %cst_101 = arith.constant dense<0.000000e+00> : vector<2x8x8xf32>
    %230 = tpu.matmul %227, %228, %cst_101 {dimension_numbers = #tpu.dot_dimension_numbers<[2], [2], [1], [1], [0, 0, 0, 1, 1, 1], [0], [0]>} : vector<2x8x8xbf16>, vector<2x8x8xbf16>, vector<2x8x8xf32> -> vector<2x8x8xf32>
    "tpu.trace_stop"() : () -> ()
    %231 = vector.broadcast %9 : vector<2x1x8xf32> to vector<2x8x8xf32>
    %232 = arith.addf %230, %231 : vector<2x8x8xf32>
    %cst_102 = arith.constant dense<0xFF800000> : vector<2x8xf32>
    %233 = vector.multi_reduction <maximumf>, %232, %cst_102 [2] : vector<2x8x8xf32> to vector<2x8xf32>
    %234 = vector.shape_cast %233 : vector<2x8xf32> to vector<2x8x1xf32>
    %235 = vector.broadcast %234 : vector<2x8x1xf32> to vector<2x8x8xf32>
    %236 = arith.subf %232, %235 : vector<2x8x8xf32>
    %237 = math.exp %236 : vector<2x8x8xf32>
    %cst_103 = arith.constant dense<0.000000e+00> : vector<2x8xf32>
    %238 = vector.multi_reduction <add>, %237, %cst_103 [2] : vector<2x8x8xf32> to vector<2x8xf32>
    %239 = vector.shape_cast %238 : vector<2x8xf32> to vector<2x8x1xf32>
    %240 = tpu.reciprocal %239 {approx = true} : vector<2x8x1xf32> -> vector<2x8x1xf32>
    %241 = vector.broadcast %240 : vector<2x8x1xf32> to vector<2x8x8xf32>
    %242 = arith.mulf %237, %241 : vector<2x8x8xf32>
    %243 = arith.truncf %242 : vector<2x8x8xf32> to vector<2x8x8xbf16>
    "tpu.trace_start"() <{level = 10 : i32, message = "bqk,bkd->bqd"}> : () -> ()
    %cst_104 = arith.constant dense<0.000000e+00> : vector<2x8x8xf32>
    %244 = tpu.matmul %243, %229, %cst_104 {dimension_numbers = #tpu.dot_dimension_numbers<[2], [1], [1], [2], [0, 0, 0, 1, 1, 2], [0], [0]>} : vector<2x8x8xbf16>, vector<2x8x8xbf16>, vector<2x8x8xf32> -> vector<2x8x8xf32>
    "tpu.trace_stop"() : () -> ()
    %245 = vector.shape_cast %244 : vector<2x8x8xf32> to vector<16x8xf32>
    %c0_105 = arith.constant 0 : index
    %c16_106 = arith.constant 16 : index
    %246 = vector.load %arg19[%c0_105, %c16_106] : memref<16x32xf32, #tpu.memory_space<vmem>>, vector<16x8xf32>
    tpu.vector_store %arg19[%c0_105, %c16_106], %245 {strides = array<i32>} : memref<16x32xf32, #tpu.memory_space<vmem>>, vector<16x8xf32>,
    %247 = vector.extract_strided_slice %186 {offsets = [0, 0, 24], sizes = [2, 8, 8], strides = [1, 1, 1]} : vector<2x8x96xbf16> to vector<2x8x8xbf16>
    %248 = vector.extract_strided_slice %186 {offsets = [0, 0, 56], sizes = [2, 8, 8], strides = [1, 1, 1]} : vector<2x8x96xbf16> to vector<2x8x8xbf16>
    %249 = vector.extract_strided_slice %186 {offsets = [0, 0, 88], sizes = [2, 8, 8], strides = [1, 1, 1]} : vector<2x8x96xbf16> to vector<2x8x8xbf16>
    "tpu.trace_start"() <{level = 10 : i32, message = "bqd,bkd->bqk"}> : () -> ()
    %cst_107 = arith.constant dense<0.000000e+00> : vector<2x8x8xf32>
    %250 = tpu.matmul %247, %248, %cst_107 {dimension_numbers = #tpu.dot_dimension_numbers<[2], [2], [1], [1], [0, 0, 0, 1, 1, 1], [0], [0]>} : vector<2x8x8xbf16>, vector<2x8x8xbf16>, vector<2x8x8xf32> -> vector<2x8x8xf32>
    "tpu.trace_stop"() : () -> ()
    %251 = vector.broadcast %9 : vector<2x1x8xf32> to vector<2x8x8xf32>
    %252 = arith.addf %250, %251 : vector<2x8x8xf32>
    %cst_108 = arith.constant dense<0xFF800000> : vector<2x8xf32>
    %253 = vector.multi_reduction <maximumf>, %252, %cst_108 [2] : vector<2x8x8xf32> to vector<2x8xf32>
    %254 = vector.shape_cast %253 : vector<2x8xf32> to vector<2x8x1xf32>
    %255 = vector.broadcast %254 : vector<2x8x1xf32> to vector<2x8x8xf32>
    %256 = arith.subf %252, %255 : vector<2x8x8xf32>
    %257 = math.exp %256 : vector<2x8x8xf32>
    %cst_109 = arith.constant dense<0.000000e+00> : vector<2x8xf32>
    %258 = vector.multi_reduction <add>, %257, %cst_109 [2] : vector<2x8x8xf32> to vector<2x8xf32>
    %259 = vector.shape_cast %258 : vector<2x8xf32> to vector<2x8x1xf32>
    %260 = tpu.reciprocal %259 {approx = true} : vector<2x8x1xf32> -> vector<2x8x1xf32>
    %261 = vector.broadcast %260 : vector<2x8x1xf32> to vector<2x8x8xf32>
    %262 = arith.mulf %257, %261 : vector<2x8x8xf32>
    %263 = arith.truncf %262 : vector<2x8x8xf32> to vector<2x8x8xbf16>
    "tpu.trace_start"() <{level = 10 : i32, message = "bqk,bkd->bqd"}> : () -> ()
    %cst_110 = arith.constant dense<0.000000e+00> : vector<2x8x8xf32>
    %264 = tpu.matmul %263, %249, %cst_110 {dimension_numbers = #tpu.dot_dimension_numbers<[2], [1], [1], [2], [0, 0, 0, 1, 1, 2], [0], [0]>} : vector<2x8x8xbf16>, vector<2x8x8xbf16>, vector<2x8x8xf32> -> vector<2x8x8xf32>
    "tpu.trace_stop"() : () -> ()
    %265 = vector.shape_cast %264 : vector<2x8x8xf32> to vector<16x8xf32>
    %c0_111 = arith.constant 0 : index
    %c24_112 = arith.constant 24 : index
    %266 = vector.load %arg19[%c0_111, %c24_112] : memref<16x32xf32, #tpu.memory_space<vmem>>, vector<16x8xf32>
    tpu.vector_store %arg19[%c0_111, %c24_112], %265 {strides = array<i32>} : memref<16x32xf32, #tpu.memory_space<vmem>>, vector<16x8xf32>,
    %c0_113 = arith.constant 0 : index
    %c0_114 = arith.constant 0 : index
    %267 = vector.load %arg19[%c0_113, %c0_114] : memref<16x32xf32, #tpu.memory_space<vmem>>, vector<16x32xf32>
    %c1_115 = arith.constant 1 : index
    %c0_116 = arith.constant 0 : index
    %c0_117 = arith.constant 0 : index
    %268 = vector.load %arg6[%c1_115, %c0_116, %c0_117] : memref<2x32x32xbf16, #tpu.memory_space<vmem>>, vector<1x32x32xbf16>
    %269 = vector.shape_cast %268 : vector<1x32x32xbf16> to vector<32x32xbf16>
    %270 = arith.truncf %267 : vector<16x32xf32> to vector<16x32xbf16>
    %cst_118 = arith.constant dense<0.000000e+00> : vector<16x32xf32>
    %271 = tpu.matmul %270, %269, %cst_118 {dimension_numbers = #tpu.dot_dimension_numbers<[1], [0], [0], [1], [0, 0, 1, 1], [], []>} : vector<16x32xbf16>, vector<32x32xbf16>, vector<16x32xf32> -> vector<16x32xf32>
    %c1_119 = arith.constant 1 : index
    %c0_120 = arith.constant 0 : index
    %c0_121 = arith.constant 0 : index
    %272 = vector.load %arg7[%c1_119, %c0_120, %c0_121] : memref<2x1x32xf32, #tpu.memory_space<vmem>>, vector<1x1x32xf32>
    %273 = vector.shape_cast %272 : vector<1x1x32xf32> to vector<1x32xf32>
    %274 = vector.broadcast %273 : vector<1x32xf32> to vector<16x32xf32>
    %275 = arith.addf %271, %274 : vector<16x32xf32>
    %276 = arith.addf %176, %275 : vector<16x32xf32>
    %c1_122 = arith.constant 1 : index
    %c0_123 = arith.constant 0 : index
    %c0_124 = arith.constant 0 : index
    %277 = vector.load %arg8[%c1_122, %c0_123, %c0_124] : memref<2x1x32xf32, #tpu.memory_space<vmem>>, vector<1x1x32xf32>
    %278 = vector.shape_cast %277 : vector<1x1x32xf32> to vector<1x32xf32>
    %c1_125 = arith.constant 1 : index
    %c0_126 = arith.constant 0 : index
    %c0_127 = arith.constant 0 : index
    %279 = vector.load %arg9[%c1_125, %c0_126, %c0_127] : memref<2x1x32xf32, #tpu.memory_space<vmem>>, vector<1x1x32xf32>
    %280 = vector.shape_cast %279 : vector<1x1x32xf32> to vector<1x32xf32>
    %cst_128 = arith.constant dense<0.000000e+00> : vector<16xf32>
    %281 = vector.multi_reduction <add>, %276, %cst_128 [1] : vector<16x32xf32> to vector<16xf32>
    %282 = vector.shape_cast %281 : vector<16xf32> to vector<16x1xf32>
    %cst_129 = arith.constant 3.200000e+01 : f32
    %283 = vector.broadcast %cst_129 : f32 to vector<16x1xf32>
    %284 = arith.divf %282, %283 : vector<16x1xf32>
    %285 = vector.broadcast %284 : vector<16x1xf32> to vector<16x32xf32>
    %286 = arith.subf %276, %285 : vector<16x32xf32>
    %287 = arith.mulf %286, %286 : vector<16x32xf32>
    %cst_130 = arith.constant dense<0.000000e+00> : vector<16xf32>
    %288 = vector.multi_reduction <add>, %287, %cst_130 [1] : vector<16x32xf32> to vector<16xf32>
    %289 = vector.shape_cast %288 : vector<16xf32> to vector<16x1xf32>
    %cst_131 = arith.constant 3.200000e+01 : f32
    %290 = vector.broadcast %cst_131 : f32 to vector<16x1xf32>
    %291 = arith.divf %289, %290 : vector<16x1xf32>
    %cst_132 = arith.constant 9.99999974E-6 : f32
    %292 = vector.broadcast %cst_132 : f32 to vector<16x1xf32>
    %293 = arith.addf %291, %292 : vector<16x1xf32>
    %294 = math.rsqrt %293 : vector<16x1xf32>
    %295 = vector.broadcast %294 : vector<16x1xf32> to vector<16x32xf32>
    %296 = arith.mulf %286, %295 : vector<16x32xf32>
    %297 = vector.broadcast %278 : vector<1x32xf32> to vector<16x32xf32>
    %298 = arith.mulf %296, %297 : vector<16x32xf32>
    %299 = vector.broadcast %280 : vector<1x32xf32> to vector<16x32xf32>
    %300 = arith.addf %298, %299 : vector<16x32xf32>
    %c1_133 = arith.constant 1 : index
    %c0_134 = arith.constant 0 : index
    %c0_135 = arith.constant 0 : index
    %301 = vector.load %arg10[%c1_133, %c0_134, %c0_135] : memref<2x32x64xbf16, #tpu.memory_space<vmem>>, vector<1x32x64xbf16>
    %302 = vector.shape_cast %301 : vector<1x32x64xbf16> to vector<32x64xbf16>
    %303 = arith.truncf %300 : vector<16x32xf32> to vector<16x32xbf16>
    %cst_136 = arith.constant dense<0.000000e+00> : vector<16x64xf32>
    %304 = tpu.matmul %303, %302, %cst_136 {dimension_numbers = #tpu.dot_dimension_numbers<[1], [0], [0], [1], [0, 0, 1, 1], [], []>} : vector<16x32xbf16>, vector<32x64xbf16>, vector<16x64xf32> -> vector<16x64xf32>
    %c1_137 = arith.constant 1 : index
    %c0_138 = arith.constant 0 : index
    %c0_139 = arith.constant 0 : index
    %305 = vector.load %arg11[%c1_137, %c0_138, %c0_139] : memref<2x1x64xf32, #tpu.memory_space<vmem>>, vector<1x1x64xf32>
    %306 = vector.shape_cast %305 : vector<1x1x64xf32> to vector<1x64xf32>
    %307 = vector.broadcast %306 : vector<1x64xf32> to vector<16x64xf32>
    %308 = arith.addf %304, %307 : vector<16x64xf32>
    %cst_140 = arith.constant 0.000000e+00 : f32
    %309 = vector.broadcast %cst_140 : f32 to vector<16x64xf32>
    %310 = arith.maximumf %308, %309 : vector<16x64xf32>
    %c1_141 = arith.constant 1 : index
    %c0_142 = arith.constant 0 : index
    %c0_143 = arith.constant 0 : index
    %311 = vector.load %arg12[%c1_141, %c0_142, %c0_143] : memref<2x64x32xbf16, #tpu.memory_space<vmem>>, vector<1x64x32xbf16>
    %312 = vector.shape_cast %311 : vector<1x64x32xbf16> to vector<64x32xbf16>
    %313 = arith.truncf %310 : vector<16x64xf32> to vector<16x64xbf16>
    %cst_144 = arith.constant dense<0.000000e+00> : vector<16x32xf32>
    %314 = tpu.matmul %313, %312, %cst_144 {dimension_numbers = #tpu.dot_dimension_numbers<[1], [0], [0], [1], [0, 0, 1, 1], [], []>} : vector<16x64xbf16>, vector<64x32xbf16>, vector<16x32xf32> -> vector<16x32xf32>
    %c1_145 = arith.constant 1 : index
    %c0_146 = arith.constant 0 : index
    %c0_147 = arith.constant 0 : index
    %315 = vector.load %arg13[%c1_145, %c0_146, %c0_147] : memref<2x1x32xf32, #tpu.memory_space<vmem>>, vector<1x1x32xf32>
    %316 = vector.shape_cast %315 : vector<1x1x32xf32> to vector<1x32xf32>
    %317 = vector.broadcast %316 : vector<1x32xf32> to vector<16x32xf32>
    %318 = arith.addf %314, %317 : vector<16x32xf32>
    %319 = arith.addf %300, %318 : vector<16x32xf32>
    %c1_148 = arith.constant 1 : index
    %c0_149 = arith.constant 0 : index
    %c0_150 = arith.constant 0 : index
    %320 = vector.load %arg14[%c1_148, %c0_149, %c0_150] : memref<2x1x32xf32, #tpu.memory_space<vmem>>, vector<1x1x32xf32>
    %321 = vector.shape_cast %320 : vector<1x1x32xf32> to vector<1x32xf32>
    %c1_151 = arith.constant 1 : index
    %c0_152 = arith.constant 0 : index
    %c0_153 = arith.constant 0 : index
    %322 = vector.load %arg15[%c1_151, %c0_152, %c0_153] : memref<2x1x32xf32, #tpu.memory_space<vmem>>, vector<1x1x32xf32>
    %323 = vector.shape_cast %322 : vector<1x1x32xf32> to vector<1x32xf32>
    %cst_154 = arith.constant dense<0.000000e+00> : vector<16xf32>
    %324 = vector.multi_reduction <add>, %319, %cst_154 [1] : vector<16x32xf32> to vector<16xf32>
    %325 = vector.shape_cast %324 : vector<16xf32> to vector<16x1xf32>
    %cst_155 = arith.constant 3.200000e+01 : f32
    %326 = vector.broadcast %cst_155 : f32 to vector<16x1xf32>
    %327 = arith.divf %325, %326 : vector<16x1xf32>
    %328 = vector.broadcast %327 : vector<16x1xf32> to vector<16x32xf32>
    %329 = arith.subf %319, %328 : vector<16x32xf32>
    %330 = arith.mulf %329, %329 : vector<16x32xf32>
    %cst_156 = arith.constant dense<0.000000e+00> : vector<16xf32>
    %331 = vector.multi_reduction <add>, %330, %cst_156 [1] : vector<16x32xf32> to vector<16xf32>
    %332 = vector.shape_cast %331 : vector<16xf32> to vector<16x1xf32>
    %cst_157 = arith.constant 3.200000e+01 : f32
    %333 = vector.broadcast %cst_157 : f32 to vector<16x1xf32>
    %334 = arith.divf %332, %333 : vector<16x1xf32>
    %cst_158 = arith.constant 9.99999974E-6 : f32
    %335 = vector.broadcast %cst_158 : f32 to vector<16x1xf32>
    %336 = arith.addf %334, %335 : vector<16x1xf32>
    %337 = math.rsqrt %336 : vector<16x1xf32>
    %338 = vector.broadcast %337 : vector<16x1xf32> to vector<16x32xf32>
    %339 = arith.mulf %329, %338 : vector<16x32xf32>
    %340 = vector.broadcast %321 : vector<1x32xf32> to vector<16x32xf32>
    %341 = arith.mulf %339, %340 : vector<16x32xf32>
    %342 = vector.broadcast %323 : vector<1x32xf32> to vector<16x32xf32>
    %343 = arith.addf %341, %342 : vector<16x32xf32>
    %344 = vector.shape_cast %343 : vector<16x32xf32> to vector<2x8x32xf32>
    %c0_159 = arith.constant 0 : index
    %c0_160 = arith.constant 0 : index
    %c0_161 = arith.constant 0 : index
    %345 = vector.load %arg2[%c0_159, %c0_160, %c0_161] : memref<2x8x1xf32, #tpu.memory_space<vmem>>, vector<2x8x1xf32>
    %346 = vector.broadcast %345 : vector<2x8x1xf32> to vector<2x8x32xf32>
    %347 = arith.mulf %344, %346 : vector<2x8x32xf32>
    %cst_162 = arith.constant dense<0.000000e+00> : vector<2x32xf32>
    %348 = vector.multi_reduction <add>, %347, %cst_162 [1] : vector<2x8x32xf32> to vector<2x32xf32>
    %349 = vector.shape_cast %348 : vector<2x32xf32> to vector<2x1x32xf32>
    %cst_163 = arith.constant dense<0.000000e+00> : vector<2x1xf32>
    %350 = vector.multi_reduction <add>, %345, %cst_163 [1] : vector<2x8x1xf32> to vector<2x1xf32>
    %351 = vector.shape_cast %350 : vector<2x1xf32> to vector<2x1x1xf32>
    %cst_164 = arith.constant 1.000000e+00 : f32
    %352 = vector.broadcast %cst_164 : f32 to vector<2x1x1xf32>
    %353 = arith.maximumf %351, %352 : vector<2x1x1xf32>
    %354 = tpu.reciprocal %353 {approx = true} : vector<2x1x1xf32> -> vector<2x1x1xf32>
    %355 = vector.broadcast %354 : vector<2x1x1xf32> to vector<2x1x32xf32>
    %356 = arith.mulf %349, %355 : vector<2x1x32xf32>
    %c0_165 = arith.constant 0 : index
    %c0_166 = arith.constant 0 : index
    %357 = vector.load %arg16[%c0_165, %c0_166] : memref<1x32xf32, #tpu.memory_space<vmem>>, vector<1x32xf32>
    %358 = vector.shape_cast %357 : vector<1x32xf32> to vector<1x1x32xf32>
    %359 = vector.broadcast %358 : vector<1x1x32xf32> to vector<2x1x32xf32>
    %360 = arith.mulf %356, %359 : vector<2x1x32xf32>
    %cst_167 = arith.constant dense<0.000000e+00> : vector<2x1xf32>
    %361 = vector.multi_reduction <add>, %360, %cst_167 [2] : vector<2x1x32xf32> to vector<2x1xf32>
    %c0_168 = arith.constant 0 : index
    %c0_169 = arith.constant 0 : index
    %362 = vector.load %arg17[%c0_168, %c0_169] : memref<1x1xf32, #tpu.memory_space<vmem>>, vector<1x1xf32>
    %363 = vector.broadcast %362 : vector<1x1xf32> to vector<2x1xf32>
    %364 = arith.addf %361, %363 : vector<2x1xf32>
    %c0_170 = arith.constant 0 : index
    %c0_171 = arith.constant 0 : index
    %365 = vector.load %arg18[%c0_170, %c0_171] : memref<2x1xf32, #tpu.memory_space<vmem>>, vector<2x1xf32>
    tpu.vector_store %arg18[%c0_170, %c0_171], %364 {strides = array<i32>} : memref<2x1xf32, #tpu.memory_space<vmem>>, vector<2x1xf32>,
    return
  }
}

</mosaic_0001>

<llo_original>
// kernel: classifier_transformer_forward.1
$region0: #{classifier_transformer_forward.1}
  #allocation0 [shape = 'u32[]', space=smem, size = 0x4, offset = 0x4, fixed_abs, tag = 'smem constant byte address 0x4 - core index']
  #allocation1 [shape = 'u32[72,128]{1,0:T(1,128)}', space=vmem, size = 0x9000, scoped, tag = 'internal scratch']
  #allocation2 [shape = 'f32[16,32]{1,0:T(8,128)}', space=vmem, size = 0x2000, scoped, tag = 'scratch operand']
  #allocation3 [shape = 'f32[1,1]{1,0:T(1,128)S(1)}', space=vmem, size = 0x200, scoped, tag = 'scoped memory for classifier_transformer_forward.1']
  %s0 = inlined_call_operand.vmem [shape: f32[2,8,32], index: 0, kind: input, shape index: {}]
  %s1 = inlined_call_operand.vmem [shape: f32[1,8,1], index: 1, kind: input, shape index: {}]
  %s2 = inlined_call_operand.vmem [shape: f32[2,8,1], index: 2, kind: input, shape index: {}]
  %s3 = inlined_call_operand.vmem [shape: f32[2,1,8], index: 3, kind: input, shape index: {}]
  %s4 = inlined_call_operand.vmem [shape: bf16[2,32,96], index: 4, kind: input, shape index: {}]
  %s5 = inlined_call_operand.hbm [shape: f32[2,1,96], index: 5, kind: input, shape index: {}]
  %s6 = inlined_call_operand.vmem [shape: bf16[2,32,32], index: 6, kind: input, shape index: {}]
  %s7 = inlined_call_operand.hbm [shape: f32[2,1,32], index: 7, kind: input, shape index: {}]
  %s8 = inlined_call_operand.hbm [shape: f32[2,1,32], index: 8, kind: input, shape index: {}]
  %s9 = inlined_call_operand.hbm [shape: f32[2,1,32], index: 9, kind: input, shape index: {}]
  %s10 = inlined_call_operand.vmem [shape: bf16[2,32,64], index: 10, kind: input, shape index: {}]
  %s11 = inlined_call_operand.hbm [shape: f32[2,1,64], index: 11, kind: input, shape index: {}]
  %s12 = inlined_call_operand.vmem [shape: bf16[2,64,32], index: 12, kind: input, shape index: {}]
  %s13 = inlined_call_operand.hbm [shape: f32[2,1,32], index: 13, kind: input, shape index: {}]
  %s14 = inlined_call_operand.vmem [shape: f32[2,1,32], index: 14, kind: input, shape index: {}]
  %s15 = inlined_call_operand.hbm [shape: f32[2,1,32], index: 15, kind: input, shape index: {}]
  %s16 = inlined_call_operand.vmem [shape: f32[1,32], index: 16, kind: input, shape index: {}]
  %s17 = inlined_call_operand.<no memory space> [shape: f32[1,1], index: 17, kind: input, shape index: {}]
  %s18 = inlined_call_operand.vmem [shape: f32[2,1], index: 18, kind: output, shape index: {}]
  %s19 = sld [smem:[#allocation0]]
  $region110: #{classifier_transformer_forward.1} parent=0
    _
  %s21 = ssub.s32 1, %s19
  %s22 = scalar_select 0, %s21, %s19
  %v23 = vstv %s17
  %24 = vst [vmem:[#allocation3] sm:$0x1] %v23
  $region1: #{classifier_transformer_forward.1} parent=0
    #allocation4 [shape = 'u8[1024]{0}', space=vmem, size = 0x400, scoped, tag = 'input window, operand 5, single buffered']
    #allocation5 [shape = 's32[1]{0}', space=sflag, size = 0x4, scoped, tag = 'scoped memory for classifier_transformer_forward.1']
    #allocation6 [shape = 'u8[1024]{0}', space=vmem, size = 0x400, scoped, tag = 'input window, operand 7, single buffered']
    #allocation7 [shape = 's32[1]{0}', space=sflag, size = 0x4, scoped, tag = 'scoped memory for classifier_transformer_forward.1']
    #allocation8 [shape = 'u8[1024]{0}', space=vmem, size = 0x400, scoped, tag = 'input window, operand 8, single buffered']
    #allocation9 [shape = 'u8[1024]{0}', space=vmem, size = 0x400, scoped, tag = 'input window, operand 9, single buffered']
    #allocation10 [shape = 's32[1]{0}', space=sflag, size = 0x4, scoped, tag = 'scoped memory for classifier_transformer_forward.1']
    #allocation11 [shape = 'u8[1024]{0}', space=vmem, size = 0x400, scoped, tag = 'input window, operand 11, single buffered']
    #allocation12 [shape = 'u8[1024]{0}', space=vmem, size = 0x400, scoped, tag = 'input window, operand 13, single buffered']
    #allocation13 [shape = 's32[1]{0}', space=sflag, size = 0x4, scoped, tag = 'scoped memory for classifier_transformer_forward.1']
    #allocation14 [shape = 'u8[1024]{0}', space=vmem, size = 0x400, scoped, tag = 'input window, operand 15, single buffered']
    %25 = vsyncpa [#allocation5], 0
    %26 = vsyncpa [#allocation7], 0
    %27 = vsyncpa [#allocation10], 0
    %28 = vsyncpa [#allocation13], 0
    // Predicated region
    $region2: #{classifier_transformer_forward.1} parent=1 // pred_check
      _
    $region3: #{classifier_transformer_forward.1} parent=1 // pred_check_branch
      %30 = sbr.rel (0) target = $region5
    $region4: #{classifier_transformer_forward.1} parent=1 // pred_region
      _
    $region5: #{classifier_transformer_forward.1} parent=1 // pred_fallthru
      _
    // Predicated region
    $region6: #{classifier_transformer_forward.1} parent=1 // pred_check
      _
    $region7: #{classifier_transformer_forward.1} parent=1 // pred_check_branch
      %32 = sbr.rel (0) target = $region9
    $region8: #{classifier_transformer_forward.1} parent=1 // pred_region
      _
    $region9: #{classifier_transformer_forward.1} parent=1 // pred_fallthru
      _
    // Predicated region
    $region10: #{classifier_transformer_forward.1} parent=1 // pred_check
      _
    $region11: #{classifier_transformer_forward.1} parent=1 // pred_check_branch
      %34 = sbr.rel (0) target = $region13
    $region12: #{classifier_transformer_forward.1} parent=1 // pred_region
      _
    $region13: #{classifier_transformer_forward.1} parent=1 // pred_fallthru
      _
    // Predicated region
    $region14: #{classifier_transformer_forward.1} parent=1 // pred_check
      _
    $region15: #{classifier_transformer_forward.1} parent=1 // pred_check_branch
      %36 = sbr.rel (0) target = $region17
    $region16: #{classifier_transformer_forward.1} parent=1 // pred_region
      _
    $region17: #{classifier_transformer_forward.1} parent=1 // pred_fallthru
      _
    // Predicated region
    $region18: #{classifier_transformer_forward.1} parent=1 // pred_check
      _
    $region19: #{classifier_transformer_forward.1} parent=1 // pred_check_branch
      %38 = sbr.rel (0) target = $region21
    $region20: #{classifier_transformer_forward.1} parent=1 // pred_region
      _
    $region21: #{classifier_transformer_forward.1} parent=1 // pred_fallthru
      _
    // Predicated region
    $region22: #{classifier_transformer_forward.1} parent=1 // pred_check
      _
    $region23: #{classifier_transformer_forward.1} parent=1 // pred_check_branch
      %40 = sbr.rel (0) target = $region25
    $region24: #{classifier_transformer_forward.1} parent=1 // pred_region
      %42 = vsyncadd [#allocation5], 0
      %s43 = sshll.u32 %s5, 4
      %s44 = int_to_ptr.hbm [resolvable:$true] %s43
      %s45 = sshll.u32 [#allocation4], 4
      %s46 = int_to_ptr.vmem [resolvable:$true] %s45
      %51 = dma.hbm_to_vmem [thread:$0]  %s44, 32, %s46, [#allocation5], 16, 16, 1
    $region25: #{classifier_transformer_forward.1} parent=1 // pred_fallthru
      _
    // Predicated region
    $region26: #{classifier_transformer_forward.1} parent=1 // pred_check
      _
    $region27: #{classifier_transformer_forward.1} parent=1 // pred_check_branch
      %53 = sbr.rel (0) target = $region29
    $region28: #{classifier_transformer_forward.1} parent=1 // pred_region
      _
    $region29: #{classifier_transformer_forward.1} parent=1 // pred_fallthru
      _
    // Predicated region
    $region30: #{classifier_transformer_forward.1} parent=1 // pred_check
      _
    $region31: #{classifier_transformer_forward.1} parent=1 // pred_check_branch
      %55 = sbr.rel (0) target = $region33
    $region32: #{classifier_transformer_forward.1} parent=1 // pred_region
      %57 = vsyncadd [#allocation7], 0
      %s58 = sshll.u32 %s7, 4
      %s59 = int_to_ptr.hbm [resolvable:$true] %s58
      %s60 = sshll.u32 [#allocation6], 4
      %s61 = int_to_ptr.vmem [resolvable:$true] %s60
      %66 = dma.hbm_to_vmem [thread:$0]  %s59, 32, %s61, [#allocation7], 16, 16, 1
    $region33: #{classifier_transformer_forward.1} parent=1 // pred_fallthru
      _
    // Predicated region
    $region34: #{classifier_transformer_forward.1} parent=1 // pred_check
      _
    $region35: #{classifier_transformer_forward.1} parent=1 // pred_check_branch
      %68 = sbr.rel (0) target = $region37
    $region36: #{classifier_transformer_forward.1} parent=1 // pred_region
      %70 = vsyncadd [#allocation7], 0
      %s71 = sshll.u32 %s8, 4
      %s72 = int_to_ptr.hbm [resolvable:$true] %s71
      %s73 = sshll.u32 [#allocation8], 4
      %s74 = int_to_ptr.vmem [resolvable:$true] %s73
      %79 = dma.hbm_to_vmem [thread:$0]  %s72, 32, %s74, [#allocation7], 16, 16, 1
    $region37: #{classifier_transformer_forward.1} parent=1 // pred_fallthru
      _
    // Predicated region
    $region38: #{classifier_transformer_forward.1} parent=1 // pred_check
      _
    $region39: #{classifier_transformer_forward.1} parent=1 // pred_check_branch
      %81 = sbr.rel (0) target = $region41
    $region40: #{classifier_transformer_forward.1} parent=1 // pred_region
      %83 = vsyncadd [#allocation10], 0
      %s84 = sshll.u32 %s9, 4
      %s85 = int_to_ptr.hbm [resolvable:$true] %s84
      %s86 = sshll.u32 [#allocation9], 4
      %s87 = int_to_ptr.vmem [resolvable:$true] %s86
      %92 = dma.hbm_to_vmem [thread:$0]  %s85, 32, %s87, [#allocation10], 16, 16, 1
    $region41: #{classifier_transformer_forward.1} parent=1 // pred_fallthru
      _
    // Predicated region
    $region42: #{classifier_transformer_forward.1} parent=1 // pred_check
      _
    $region43: #{classifier_transformer_forward.1} parent=1 // pred_check_branch
      %94 = sbr.rel (0) target = $region45
    $region44: #{classifier_transformer_forward.1} parent=1 // pred_region
      _
    $region45: #{classifier_transformer_forward.1} parent=1 // pred_fallthru
      _
    // Predicated region
    $region46: #{classifier_transformer_forward.1} parent=1 // pred_check
      _
    $region47: #{classifier_transformer_forward.1} parent=1 // pred_check_branch
      %96 = sbr.rel (0) target = $region49
    $region48: #{classifier_transformer_forward.1} parent=1 // pred_region
      %98 = vsyncadd [#allocation10], 0
      %s99 = sshll.u32 %s11, 4
      %s100 = int_to_ptr.hbm [resolvable:$true] %s99
      %s101 = sshll.u32 [#allocation11], 4
      %s102 = int_to_ptr.vmem [resolvable:$true] %s101
      %107 = dma.hbm_to_vmem [thread:$0]  %s100, 32, %s102, [#allocation10], 16, 16, 1
    $region49: #{classifier_transformer_forward.1} parent=1 // pred_fallthru
      _
    // Predicated region
    $region50: #{classifier_transformer_forward.1} parent=1 // pred_check
      _
    $region51: #{classifier_transformer_forward.1} parent=1 // pred_check_branch
      %109 = sbr.rel (0) target = $region53
    $region52: #{classifier_transformer_forward.1} parent=1 // pred_region
      _
    $region53: #{classifier_transformer_forward.1} parent=1 // pred_fallthru
      _
    // Predicated region
    $region54: #{classifier_transformer_forward.1} parent=1 // pred_check
      _
    $region55: #{classifier_transformer_forward.1} parent=1 // pred_check_branch
      %111 = sbr.rel (0) target = $region57
    $region56: #{classifier_transformer_forward.1} parent=1 // pred_region
      %113 = vsyncadd [#allocation13], 0
      %s114 = sshll.u32 %s13, 4
      %s115 = int_to_ptr.hbm [resolvable:$true] %s114
      %s116 = sshll.u32 [#allocation12], 4
      %s117 = int_to_ptr.vmem [resolvable:$true] %s116
      %122 = dma.hbm_to_vmem [thread:$0]  %s115, 32, %s117, [#allocation13], 16, 16, 1
    $region57: #{classifier_transformer_forward.1} parent=1 // pred_fallthru
      _
    // Predicated region
    $region58: #{classifier_transformer_forward.1} parent=1 // pred_check
      _
    $region59: #{classifier_transformer_forward.1} parent=1 // pred_check_branch
      %124 = sbr.rel (0) target = $region61
    $region60: #{classifier_transformer_forward.1} parent=1 // pred_region
      _
    $region61: #{classifier_transformer_forward.1} parent=1 // pred_fallthru
      _
    // Predicated region
    $region62: #{classifier_transformer_forward.1} parent=1 // pred_check
      _
    $region63: #{classifier_transformer_forward.1} parent=1 // pred_check_branch
      %126 = sbr.rel (0) target = $region65
    $region64: #{classifier_transformer_forward.1} parent=1 // pred_region
      %128 = vsyncadd [#allocation13], 0
      %s129 = sshll.u32 %s15, 4
      %s130 = int_to_ptr.hbm [resolvable:$true] %s129
      %s131 = sshll.u32 [#allocation14], 4
      %s132 = int_to_ptr.vmem [resolvable:$true] %s131
      %137 = dma.hbm_to_vmem [thread:$0]  %s130, 32, %s132, [#allocation13], 16, 16, 1
    $region65: #{classifier_transformer_forward.1} parent=1 // pred_fallthru
      _
    // Predicated region
    $region66: #{classifier_transformer_forward.1} parent=1 // pred_check
      _
    $region67: #{classifier_transformer_forward.1} parent=1 // pred_check_branch
      %139 = sbr.rel (0) target = $region69
    $region68: #{classifier_transformer_forward.1} parent=1 // pred_region
      _
    $region69: #{classifier_transformer_forward.1} parent=1 // pred_fallthru
      _
    // Predicated region
    $region70: #{classifier_transformer_forward.1} parent=1 // pred_check
      _
    $region71: #{classifier_transformer_forward.1} parent=1 // pred_check_branch
      %141 = sbr.rel (0) target = $region73
    $region72: #{classifier_transformer_forward.1} parent=1 // pred_region
      _
    $region73: #{classifier_transformer_forward.1} parent=1 // pred_fallthru
      _
    // Predicated region
    $region74: #{classifier_transformer_forward.1} parent=1 // pred_check
      _
    $region75: #{classifier_transformer_forward.1} parent=1 // pred_check_branch
      %143 = sbr.rel (0) target = $region77
    $region76: #{classifier_transformer_forward.1} parent=1 // pred_region
      %145 = dma.done [#allocation5], 32
    $region77: #{classifier_transformer_forward.1} parent=1 // pred_fallthru
      _
    // Predicated region
    $region78: #{classifier_transformer_forward.1} parent=1 // pred_check
      _
    $region79: #{classifier_transformer_forward.1} parent=1 // pred_check_branch
      %147 = sbr.rel (0) target = $region81
    $region80: #{classifier_transformer_forward.1} parent=1 // pred_region
      %149 = dma.done [#allocation7], 32
    $region81: #{classifier_transformer_forward.1} parent=1 // pred_fallthru
      _
    // Predicated region
    $region82: #{classifier_transformer_forward.1} parent=1 // pred_check
      _
    $region83: #{classifier_transformer_forward.1} parent=1 // pred_check_branch
      %151 = sbr.rel (0) target = $region85
    $region84: #{classifier_transformer_forward.1} parent=1 // pred_region
      %153 = dma.done [#allocation7], 32
    $region85: #{classifier_transformer_forward.1} parent=1 // pred_fallthru
      _
    // Predicated region
    $region86: #{classifier_transformer_forward.1} parent=1 // pred_check
      _
    $region87: #{classifier_transformer_forward.1} parent=1 // pred_check_branch
      %155 = sbr.rel (0) target = $region89
    $region88: #{classifier_transformer_forward.1} parent=1 // pred_region
      %157 = dma.done [#allocation10], 32
    $region89: #{classifier_transformer_forward.1} parent=1 // pred_fallthru
      _
    // Predicated region
    $region90: #{classifier_transformer_forward.1} parent=1 // pred_check
      _
    $region91: #{classifier_transformer_forward.1} parent=1 // pred_check_branch
      %159 = sbr.rel (0) target = $region93
    $region92: #{classifier_transformer_forward.1} parent=1 // pred_region
      %161 = dma.done [#allocation10], 32
    $region93: #{classifier_transformer_forward.1} parent=1 // pred_fallthru
      _
    // Predicated region
    $region94: #{classifier_transformer_forward.1} parent=1 // pred_check
      _
    $region95: #{classifier_transformer_forward.1} parent=1 // pred_check_branch
      %163 = sbr.rel (0) target = $region97
    $region96: #{classifier_transformer_forward.1} parent=1 // pred_region
      %165 = dma.done [#allocation13], 32
    $region97: #{classifier_transformer_forward.1} parent=1 // pred_fallthru
      _
    // Predicated region
    $region98: #{classifier_transformer_forward.1} parent=1 // pred_check
      _
    $region99: #{classifier_transformer_forward.1} parent=1 // pred_check_branch
      %167 = sbr.rel (0) target = $region101
    $region100: #{classifier_transformer_forward.1} parent=1 // pred_region
      %169 = dma.done [#allocation13], 32
    $region101: #{classifier_transformer_forward.1} parent=1 // pred_fallthru
      _
    %v171 = vld [vmem:[%s0] sm:$0xff]
    %v172 = vld [vmem:[%s0 + $0x8] sm:$0xff]
    %v173 = vld [vmem:[%s1] sm:$0xff]
    %175 = vset.pattern.permute.xlu0 0
    %176 = vperm.xlu0 %175, %v173
    %v177 = vpop.permute.xlu0 %176
    %v179 = vadd.f32 %v171, %v177
    %v180 = vadd.f32 %v172, %v177
    %v181 = vld [vmem:[%s3] sm:$0x1]
    %v182 = vld [vmem:[%s3 + $0x1] sm:$0x1]
    %v183 = vsub.f32 %v181, 1.0
    %v184 = vsub.f32 %v182, 1.0
    %v185 = vmul.f32 %v183, 1e+30
    %v186 = vmul.f32 %v184, 1e+30
    %v187 = vld [vmem:[%s4] sm:$0xf]
    %v188 = vld [vmem:[%s4 + $0x4] sm:$0xf]
    %v189 = vld [vmem:[%s4 + $0x8] sm:$0xf]
    %v190 = vld [vmem:[%s4 + $0xc] sm:$0xf]
    %v191 = vpack.c.bf16 %v180, %v179
    %v192 = vld [vmem:[#allocation4] sm:$0x1]
    %v194 = vperm.slane %v192, 0
    %v200 = vunpack.c.l.b16 %v187
    %v201 = vunpack.c.l.b16 %v188
    %v202 = vunpack.c.l.b16 %v189
    %v203 = vunpack.c.l.b16 %v190
    %v204 = vpack.c.b16 %v201, %v200
    %v205 = vpack.c.b16 %v203, %v202
    %vm208 = vcmask 261120
    %v210 = vsel %vm208, %v191, 0
    %212 = vmatpush.bf16.msra.mxu0 0
    %213 = vmatpush.bf16.msra.mxu0 0
    %214 = vmatpush.bf16.msra.mxu0 0
    %215 = vmatpush.bf16.msra.mxu0 0
    %216 = vmatpush.bf16.msra.mxu0 0
    %217 = vmatpush.bf16.msra.mxu0 0
    %218 = vmatpush.bf16.msra.mxu0 %v205
    %219 = vmatpush.bf16.msra.mxu0 %v204
    %220 = vmatmul.bf16.gmra.mxu0 %v210
    %v221 = vpop.f32.mrf.mxu0
    %v222 = vadd.f32 %v194, %v221
    %v223 = vpop.f32.mrf.mxu0
    %v224 = vadd.f32 %v194, %v223
    %225 = vdwg.mxu0
    %v226 = vpack.c.bf16 %v222, %v222
    %v227 = vpack.c.bf16 %v224, %v224
    %v230 = vperm.slane %v185, 0
    %v231 = vperm.slane %v186, 0
    %v235 = vunpack.c.l.b16 %v226
    %v236 = vpack.c.b16 %v235, %v235
    %237 = vrot.lane.b32.xlu0 %v236, 96
    %v238 = vpop.permute.xlu0 %237
    %vm239 = vcmask 64512
    %v241 = vsel %vm239, %v226, 0
    %v244 = vsel %vm239, %v238, 0
    %246 = vmatpush.bf16.xpose.msra.mxu0 0
    %247 = vmatpush.bf16.xpose.msra.mxu0 0
    %248 = vmatpush.bf16.xpose.msra.mxu0 0
    %249 = vmatpush.bf16.xpose.msra.mxu0 0
    %250 = vmatpush.bf16.xpose.msra.mxu0 0
    %251 = vmatpush.bf16.xpose.msra.mxu0 0
    %252 = vmatpush.bf16.xpose.msra.mxu0 0
    %253 = vmatpush.bf16.xpose.msra.mxu0 %v244
    %254 = vmatmul.bf16.gmra.mxu0 %v241
    %v255 = vpop.f32.mrf.mxu0
    %v256 = vadd.f32 %v230, %v255
    %v257 = vpop.f32.mrf.mxu0
    %258 = vdwg.mxu0
    %v260 = vunpack.c.l.b16 %v227
    %v261 = vpack.c.b16 %v260, %v260
    %262 = vrot.lane.b32.xlu0 %v261, 96
    %v263 = vpop.permute.xlu0 %262
    %v265 = vsel %vm239, %v227, 0
    %v268 = vsel %vm239, %v263, 0
    %270 = vmatpush.bf16.xpose.msra.mxu0 0
    %271 = vmatpush.bf16.xpose.msra.mxu0 0
    %272 = vmatpush.bf16.xpose.msra.mxu0 0
    %273 = vmatpush.bf16.xpose.msra.mxu0 0
    %274 = vmatpush.bf16.xpose.msra.mxu0 0
    %275 = vmatpush.bf16.xpose.msra.mxu0 0
    %276 = vmatpush.bf16.xpose.msra.mxu0 0
    %277 = vmatpush.bf16.xpose.msra.mxu0 %v268
    %278 = vmatmul.bf16.gmra.mxu0 %v265
    %v279 = vpop.f32.mrf.mxu0
    %v280 = vadd.f32 %v231, %v279
    %v281 = vpop.f32.mrf.mxu0
    %282 = vdwg.mxu0
    %v283 = vsel %vm239, %v256, -inf
    %284 = vmax.xlane.f32.xlu0 %v283
    %v285 = vpop.xlane.xlu0 %284
    %v286 = vsel %vm239, %v280, -inf
    %287 = vmax.xlane.f32.xlu0 %v286
    %v288 = vpop.xlane.xlu0 %287
    %v289 = vsub.f32 %v256, %v285
    %v290 = vsub.f32 %v280, %v288
    %v291 = vmul.f32 %v289, 1.442695
    %v292 = vpow.pop %v291
    %v293 = vmul.f32 %v290, 1.442695
    %v294 = vpow.pop %v293
    %v295 = vsel %vm239, %v292, 0.0
    %296 = vadd.xlane.f32.xlu0 %v295
    %v297 = vpop.xlane.xlu0 %296
    %v298 = vsel %vm239, %v294, 0.0
    %299 = vadd.xlane.f32.xlu0 %v298
    %v300 = vpop.xlane.xlu0 %299
    %v301 = vrcp.pop %v297
    %v302 = vrcp.pop %v300
    %v303 = vmul.f32 %v292, %v301
    %v304 = vmul.f32 %v294, %v302
    %v305 = vpack.c.bf16 %v303, %v303
    %v306 = vpack.c.bf16 %v304, %v304
    %307 = vrot.lane.b32.xlu0 %v236, 64
    %v308 = vpop.permute.xlu0 %307
    %v310 = vsel %vm239, %v305, 0
    %vm312 = vcmask 1043456
    %v314 = vsel %vm312, %v308, 0
    %316 = vmatpush.bf16.msra.mxu0 0
    %317 = vmatpush.bf16.msra.mxu0 0
    %318 = vmatpush.bf16.msra.mxu0 0
    %319 = vmatpush.bf16.msra.mxu0 0
    %320 = vmatpush.bf16.msra.mxu0 0
    %321 = vmatpush.bf16.msra.mxu0 0
    %322 = vmatpush.bf16.msra.mxu0 0
    %323 = vmatpush.bf16.msra.mxu0 %v314
    %324 = vmatmul.bf16.gmra.mxu0 %v310
    %v325 = vpop.f32.mrf.mxu0
    %v326 = vadd.f32 0.0, %v325
    %v327 = vpop.f32.mrf.mxu0
    %328 = vdwg.mxu0
    %329 = vrot.lane.b32.xlu0 %v261, 64
    %v330 = vpop.permute.xlu0 %329
    %v332 = vsel %vm239, %v306, 0
    %v335 = vsel %vm312, %v330, 0
    %337 = vmatpush.bf16.msra.mxu0 0
    %338 = vmatpush.bf16.msra.mxu0 0
    %339 = vmatpush.bf16.msra.mxu0 0
    %340 = vmatpush.bf16.msra.mxu0 0
    %341 = vmatpush.bf16.msra.mxu0 0
    %342 = vmatpush.bf16.msra.mxu0 0
    %343 = vmatpush.bf16.msra.mxu0 0
    %344 = vmatpush.bf16.msra.mxu0 %v335
    %345 = vmatmul.bf16.gmra.mxu0 %v332
    %v346 = vpop.f32.mrf.mxu0
    %v347 = vadd.f32 0.0, %v346
    %v348 = vpop.f32.mrf.mxu0
    %349 = vdwg.mxu0
    %350 = vst.msk [vmem:[#allocation2] sm:$0xff] %vm239, %v326
    %351 = vst.msk [vmem:[#allocation2 + $0x8] sm:$0xff] %vm239, %v347
    %352 = vrot.lane.b32.xlu0 %v236, 120
    %v353 = vpop.permute.xlu0 %352
    %354 = vrot.lane.b32.xlu0 %v236, 88
    %v355 = vpop.permute.xlu0 %354
    %v357 = vsel %vm239, %v353, 0
    %v360 = vsel %vm239, %v355, 0
    %362 = vmatpush.bf16.xpose.msra.mxu0 0
    %363 = vmatpush.bf16.xpose.msra.mxu0 0
    %364 = vmatpush.bf16.xpose.msra.mxu0 0
    %365 = vmatpush.bf16.xpose.msra.mxu0 0
    %366 = vmatpush.bf16.xpose.msra.mxu0 0
    %367 = vmatpush.bf16.xpose.msra.mxu0 0
    %368 = vmatpush.bf16.xpose.msra.mxu0 0
    %369 = vmatpush.bf16.xpose.msra.mxu0 %v360
    %370 = vmatmul.bf16.gmra.mxu0 %v357
    %v371 = vpop.f32.mrf.mxu0
    %v372 = vadd.f32 %v230, %v371
    %v373 = vpop.f32.mrf.mxu0
    %374 = vdwg.mxu0
    %375 = vrot.lane.b32.xlu0 %v261, 120
    %v376 = vpop.permute.xlu0 %375
    %377 = vrot.lane.b32.xlu0 %v261, 88
    %v378 = vpop.permute.xlu0 %377
    %v380 = vsel %vm239, %v376, 0
    %v383 = vsel %vm239, %v378, 0
    %385 = vmatpush.bf16.xpose.msra.mxu0 0
    %386 = vmatpush.bf16.xpose.msra.mxu0 0
    %387 = vmatpush.bf16.xpose.msra.mxu0 0
    %388 = vmatpush.bf16.xpose.msra.mxu0 0
    %389 = vmatpush.bf16.xpose.msra.mxu0 0
    %390 = vmatpush.bf16.xpose.msra.mxu0 0
    %391 = vmatpush.bf16.xpose.msra.mxu0 0
    %392 = vmatpush.bf16.xpose.msra.mxu0 %v383
    %393 = vmatmul.bf16.gmra.mxu0 %v380
    %v394 = vpop.f32.mrf.mxu0
    %v395 = vadd.f32 %v231, %v394
    %v396 = vpop.f32.mrf.mxu0
    %397 = vdwg.mxu0
    %v398 = vsel %vm239, %v372, -inf
    %399 = vmax.xlane.f32.xlu0 %v398
    %v400 = vpop.xlane.xlu0 %399
    %v401 = vsel %vm239, %v395, -inf
    %402 = vmax.xlane.f32.xlu0 %v401
    %v403 = vpop.xlane.xlu0 %402
    %v404 = vsub.f32 %v372, %v400
    %v405 = vsub.f32 %v395, %v403
    %v406 = vmul.f32 %v404, 1.442695
    %v407 = vpow.pop %v406
    %v408 = vmul.f32 %v405, 1.442695
    %v409 = vpow.pop %v408
    %v410 = vsel %vm239, %v407, 0.0
    %411 = vadd.xlane.f32.xlu0 %v410
    %v412 = vpop.xlane.xlu0 %411
    %v413 = vsel %vm239, %v409, 0.0
    %414 = vadd.xlane.f32.xlu0 %v413
    %v415 = vpop.xlane.xlu0 %414
    %v416 = vrcp.pop %v412
    %v417 = vrcp.pop %v415
    %v418 = vmul.f32 %v407, %v416
    %v419 = vmul.f32 %v409, %v417
    %v420 = vpack.c.bf16 %v418, %v418
    %v421 = vpack.c.bf16 %v419, %v419
    %422 = vrot.lane.b32.xlu0 %v236, 56
    %v423 = vpop.permute.xlu0 %422
    %v425 = vsel %vm239, %v420, 0
    %v428 = vsel %vm312, %v423, 0
    %430 = vmatpush.bf16.msra.mxu0 0
    %431 = vmatpush.bf16.msra.mxu0 0
    %432 = vmatpush.bf16.msra.mxu0 0
    %433 = vmatpush.bf16.msra.mxu0 0
    %434 = vmatpush.bf16.msra.mxu0 0
    %435 = vmatpush.bf16.msra.mxu0 0
    %436 = vmatpush.bf16.msra.mxu0 0
    %437 = vmatpush.bf16.msra.mxu0 %v428
    %438 = vmatmul.bf16.gmra.mxu0 %v425
    %v439 = vpop.f32.mrf.mxu0
    %v440 = vadd.f32 0.0, %v439
    %v441 = vpop.f32.mrf.mxu0
    %442 = vdwg.mxu0
    %443 = vrot.lane.b32.xlu0 %v261, 56
    %v444 = vpop.permute.xlu0 %443
    %v446 = vsel %vm239, %v421, 0
    %v449 = vsel %vm312, %v444, 0
    %451 = vmatpush.bf16.msra.mxu0 0
    %452 = vmatpush.bf16.msra.mxu0 0
    %453 = vmatpush.bf16.msra.mxu0 0
    %454 = vmatpush.bf16.msra.mxu0 0
    %455 = vmatpush.bf16.msra.mxu0 0
    %456 = vmatpush.bf16.msra.mxu0 0
    %457 = vmatpush.bf16.msra.mxu0 0
    %458 = vmatpush.bf16.msra.mxu0 %v449
    %459 = vmatmul.bf16.gmra.mxu0 %v446
    %v460 = vpop.f32.mrf.mxu0
    %v461 = vadd.f32 0.0, %v460
    %v462 = vpop.f32.mrf.mxu0
    %463 = vdwg.mxu0
    %466 = vrot.lane.b32.xlu0 %v440, 8
    %v467 = vpop.permute.xlu0 %466
    %468 = vrot.lane.b32.xlu0 %v461, 8
    %v469 = vpop.permute.xlu0 %468
    %vm472 = vcmask 130112
    %473 = vst.msk [vmem:[#allocation2] sm:$0xff] %vm472, %v467
    %474 = vst.msk [vmem:[#allocation2 + $0x8] sm:$0xff] %vm472, %v469
    %475 = vrot.lane.b32.xlu0 %v236, 112
    %v476 = vpop.permute.xlu0 %475
    %477 = vrot.lane.b32.xlu0 %v236, 80
    %v478 = vpop.permute.xlu0 %477
    %v480 = vsel %vm239, %v476, 0
    %v483 = vsel %vm239, %v478, 0
    %485 = vmatpush.bf16.xpose.msra.mxu0 0
    %486 = vmatpush.bf16.xpose.msra.mxu0 0
    %487 = vmatpush.bf16.xpose.msra.mxu0 0
    %488 = vmatpush.bf16.xpose.msra.mxu0 0
    %489 = vmatpush.bf16.xpose.msra.mxu0 0
    %490 = vmatpush.bf16.xpose.msra.mxu0 0
    %491 = vmatpush.bf16.xpose.msra.mxu0 0
    %492 = vmatpush.bf16.xpose.msra.mxu0 %v483
    %493 = vmatmul.bf16.gmra.mxu0 %v480
    %v494 = vpop.f32.mrf.mxu0
    %v495 = vadd.f32 %v230, %v494
    %v496 = vpop.f32.mrf.mxu0
    %497 = vdwg.mxu0
    %498 = vrot.lane.b32.xlu0 %v261, 112
    %v499 = vpop.permute.xlu0 %498
    %500 = vrot.lane.b32.xlu0 %v261, 80
    %v501 = vpop.permute.xlu0 %500
    %v503 = vsel %vm239, %v499, 0
    %v506 = vsel %vm239, %v501, 0
    %508 = vmatpush.bf16.xpose.msra.mxu0 0
    %509 = vmatpush.bf16.xpose.msra.mxu0 0
    %510 = vmatpush.bf16.xpose.msra.mxu0 0
    %511 = vmatpush.bf16.xpose.msra.mxu0 0
    %512 = vmatpush.bf16.xpose.msra.mxu0 0
    %513 = vmatpush.bf16.xpose.msra.mxu0 0
    %514 = vmatpush.bf16.xpose.msra.mxu0 0
    %515 = vmatpush.bf16.xpose.msra.mxu0 %v506
    %516 = vmatmul.bf16.gmra.mxu0 %v503
    %v517 = vpop.f32.mrf.mxu0
    %v518 = vadd.f32 %v231, %v517
    %v519 = vpop.f32.mrf.mxu0
    %520 = vdwg.mxu0
    %v521 = vsel %vm239, %v495, -inf
    %522 = vmax.xlane.f32.xlu0 %v521
    %v523 = vpop.xlane.xlu0 %522
    %v524 = vsel %vm239, %v518, -inf
    %525 = vmax.xlane.f32.xlu0 %v524
    %v526 = vpop.xlane.xlu0 %525
    %v527 = vsub.f32 %v495, %v523
    %v528 = vsub.f32 %v518, %v526
    %v529 = vmul.f32 %v527, 1.442695
    %v530 = vpow.pop %v529
    %v531 = vmul.f32 %v528, 1.442695
    %v532 = vpow.pop %v531
    %v533 = vsel %vm239, %v530, 0.0
    %534 = vadd.xlane.f32.xlu0 %v533
    %v535 = vpop.xlane.xlu0 %534
    %v536 = vsel %vm239, %v532, 0.0
    %537 = vadd.xlane.f32.xlu0 %v536
    %v538 = vpop.xlane.xlu0 %537
    %v539 = vrcp.pop %v535
    %v540 = vrcp.pop %v538
    %v541 = vmul.f32 %v530, %v539
    %v542 = vmul.f32 %v532, %v540
    %v543 = vpack.c.bf16 %v541, %v541
    %v544 = vpack.c.bf16 %v542, %v542
    %545 = vrot.lane.b32.xlu0 %v236, 48
    %v546 = vpop.permute.xlu0 %545
    %v548 = vsel %vm239, %v543, 0
    %v551 = vsel %vm312, %v546, 0
    %553 = vmatpush.bf16.msra.mxu0 0
    %554 = vmatpush.bf16.msra.mxu0 0
    %555 = vmatpush.bf16.msra.mxu0 0
    %556 = vmatpush.bf16.msra.mxu0 0
    %557 = vmatpush.bf16.msra.mxu0 0
    %558 = vmatpush.bf16.msra.mxu0 0
    %559 = vmatpush.bf16.msra.mxu0 0
    %560 = vmatpush.bf16.msra.mxu0 %v551
    %561 = vmatmul.bf16.gmra.mxu0 %v548
    %v562 = vpop.f32.mrf.mxu0
    %v563 = vadd.f32 0.0, %v562
    %v564 = vpop.f32.mrf.mxu0
    %565 = vdwg.mxu0
    %566 = vrot.lane.b32.xlu0 %v261, 48
    %v567 = vpop.permute.xlu0 %566
    %v569 = vsel %vm239, %v544, 0
    %v572 = vsel %vm312, %v567, 0
    %574 = vmatpush.bf16.msra.mxu0 0
    %575 = vmatpush.bf16.msra.mxu0 0
    %576 = vmatpush.bf16.msra.mxu0 0
    %577 = vmatpush.bf16.msra.mxu0 0
    %578 = vmatpush.bf16.msra.mxu0 0
    %579 = vmatpush.bf16.msra.mxu0 0
    %580 = vmatpush.bf16.msra.mxu0 0
    %581 = vmatpush.bf16.msra.mxu0 %v572
    %582 = vmatmul.bf16.gmra.mxu0 %v569
    %v583 = vpop.f32.mrf.mxu0
    %v584 = vadd.f32 0.0, %v583
    %v585 = vpop.f32.mrf.mxu0
    %586 = vdwg.mxu0
    %589 = vrot.lane.b32.xlu0 %v563, 16
    %v590 = vpop.permute.xlu0 %589
    %591 = vrot.lane.b32.xlu0 %v584, 16
    %v592 = vpop.permute.xlu0 %591
    %vm595 = vcmask 195712
    %596 = vst.msk [vmem:[#allocation2] sm:$0xff] %vm595, %v590
    %597 = vst.msk [vmem:[#allocation2 + $0x8] sm:$0xff] %vm595, %v592
    %598 = vrot.lane.b32.xlu0 %v236, 104
    %v599 = vpop.permute.xlu0 %598
    %600 = vrot.lane.b32.xlu0 %v236, 72
    %v601 = vpop.permute.xlu0 %600
    %v603 = vsel %vm239, %v599, 0
    %v606 = vsel %vm239, %v601, 0
    %608 = vmatpush.bf16.xpose.msra.mxu0 0
    %609 = vmatpush.bf16.xpose.msra.mxu0 0
    %610 = vmatpush.bf16.xpose.msra.mxu0 0
    %611 = vmatpush.bf16.xpose.msra.mxu0 0
    %612 = vmatpush.bf16.xpose.msra.mxu0 0
    %613 = vmatpush.bf16.xpose.msra.mxu0 0
    %614 = vmatpush.bf16.xpose.msra.mxu0 0
    %615 = vmatpush.bf16.xpose.msra.mxu0 %v606
    %616 = vmatmul.bf16.gmra.mxu0 %v603
    %v617 = vpop.f32.mrf.mxu0
    %v618 = vadd.f32 %v230, %v617
    %v619 = vpop.f32.mrf.mxu0
    %620 = vdwg.mxu0
    %621 = vrot.lane.b32.xlu0 %v261, 104
    %v622 = vpop.permute.xlu0 %621
    %623 = vrot.lane.b32.xlu0 %v261, 72
    %v624 = vpop.permute.xlu0 %623
    %v626 = vsel %vm239, %v622, 0
    %v629 = vsel %vm239, %v624, 0
    %631 = vmatpush.bf16.xpose.msra.mxu0 0
    %632 = vmatpush.bf16.xpose.msra.mxu0 0
    %633 = vmatpush.bf16.xpose.msra.mxu0 0
    %634 = vmatpush.bf16.xpose.msra.mxu0 0
    %635 = vmatpush.bf16.xpose.msra.mxu0 0
    %636 = vmatpush.bf16.xpose.msra.mxu0 0
    %637 = vmatpush.bf16.xpose.msra.mxu0 0
    %638 = vmatpush.bf16.xpose.msra.mxu0 %v629
    %639 = vmatmul.bf16.gmra.mxu0 %v626
    %v640 = vpop.f32.mrf.mxu0
    %v641 = vadd.f32 %v231, %v640
    %v642 = vpop.f32.mrf.mxu0
    %643 = vdwg.mxu0
    %v644 = vsel %vm239, %v618, -inf
    %645 = vmax.xlane.f32.xlu0 %v644
    %v646 = vpop.xlane.xlu0 %645
    %v647 = vsel %vm239, %v641, -inf
    %648 = vmax.xlane.f32.xlu0 %v647
    %v649 = vpop.xlane.xlu0 %648
    %v650 = vsub.f32 %v618, %v646
    %v651 = vsub.f32 %v641, %v649
    %v652 = vmul.f32 %v650, 1.442695
    %v653 = vpow.pop %v652
    %v654 = vmul.f32 %v651, 1.442695
    %v655 = vpow.pop %v654
    %v656 = vsel %vm239, %v653, 0.0
    %657 = vadd.xlane.f32.xlu0 %v656
    %v658 = vpop.xlane.xlu0 %657
    %v659 = vsel %vm239, %v655, 0.0
    %660 = vadd.xlane.f32.xlu0 %v659
    %v661 = vpop.xlane.xlu0 %660
    %v662 = vrcp.pop %v658
    %v663 = vrcp.pop %v661
    %v664 = vmul.f32 %v653, %v662
    %v665 = vmul.f32 %v655, %v663
    %v666 = vpack.c.bf16 %v664, %v664
    %v667 = vpack.c.bf16 %v665, %v665
    %668 = vrot.lane.b32.xlu0 %v236, 40
    %v669 = vpop.permute.xlu0 %668
    %v671 = vsel %vm239, %v666, 0
    %v674 = vsel %vm312, %v669, 0
    %676 = vmatpush.bf16.msra.mxu0 0
    %677 = vmatpush.bf16.msra.mxu0 0
    %678 = vmatpush.bf16.msra.mxu0 0
    %679 = vmatpush.bf16.msra.mxu0 0
    %680 = vmatpush.bf16.msra.mxu0 0
    %681 = vmatpush.bf16.msra.mxu0 0
    %682 = vmatpush.bf16.msra.mxu0 0
    %683 = vmatpush.bf16.msra.mxu0 %v674
    %684 = vmatmul.bf16.gmra.mxu0 %v671
    %v685 = vpop.f32.mrf.mxu0
    %v686 = vadd.f32 0.0, %v685
    %v687 = vpop.f32.mrf.mxu0
    %688 = vdwg.mxu0
    %689 = vrot.lane.b32.xlu0 %v261, 40
    %v690 = vpop.permute.xlu0 %689
    %v692 = vsel %vm239, %v667, 0
    %v695 = vsel %vm312, %v690, 0
    %697 = vmatpush.bf16.msra.mxu0 0
    %698 = vmatpush.bf16.msra.mxu0 0
    %699 = vmatpush.bf16.msra.mxu0 0
    %700 = vmatpush.bf16.msra.mxu0 0
    %701 = vmatpush.bf16.msra.mxu0 0
    %702 = vmatpush.bf16.msra.mxu0 0
    %703 = vmatpush.bf16.msra.mxu0 0
    %704 = vmatpush.bf16.msra.mxu0 %v695
    %705 = vmatmul.bf16.gmra.mxu0 %v692
    %v706 = vpop.f32.mrf.mxu0
    %v707 = vadd.f32 0.0, %v706
    %v708 = vpop.f32.mrf.mxu0
    %709 = vdwg.mxu0
    %712 = vrot.lane.b32.xlu0 %v686, 24
    %v713 = vpop.permute.xlu0 %712
    %714 = vrot.lane.b32.xlu0 %v707, 24
    %v715 = vpop.permute.xlu0 %714
    %vm718 = vcmask 261312
    %719 = vst.msk [vmem:[#allocation2] sm:$0xff] %vm718, %v713
    %720 = vst.msk [vmem:[#allocation2 + $0x8] sm:$0xff] %vm718, %v715
    %v721 = vld [vmem:[#allocation2] sm:$0xff]
    %v722 = vld [vmem:[#allocation2 + $0x8] sm:$0xff]
    %v723 = vld [vmem:[%s6] sm:$0xf]
    %v724 = vld [vmem:[%s6 + $0x4] sm:$0xf]
    %v725 = vld [vmem:[%s6 + $0x8] sm:$0xf]
    %v726 = vld [vmem:[%s6 + $0xc] sm:$0xf]
    %v727 = vpack.c.bf16 %v722, %v721
    %v728 = vld [vmem:[#allocation6] sm:$0x1]
    %v730 = vperm.slane %v728, 0
    %v736 = vunpack.c.l.b16 %v723
    %v737 = vunpack.c.l.b16 %v724
    %v738 = vunpack.c.l.b16 %v725
    %v739 = vunpack.c.l.b16 %v726
    %v740 = vpack.c.b16 %v737, %v736
    %v741 = vpack.c.b16 %v739, %v738
    %v745 = vsel %vm208, %v727, 0
    %747 = vmatpush.bf16.msra.mxu0 0
    %748 = vmatpush.bf16.msra.mxu0 0
    %749 = vmatpush.bf16.msra.mxu0 0
    %750 = vmatpush.bf16.msra.mxu0 0
    %751 = vmatpush.bf16.msra.mxu0 0
    %752 = vmatpush.bf16.msra.mxu0 0
    %753 = vmatpush.bf16.msra.mxu0 %v741
    %754 = vmatpush.bf16.msra.mxu0 %v740
    %755 = vmatmul.bf16.gmra.mxu0 %v745
    %v756 = vpop.f32.mrf.mxu0
    %v757 = vadd.f32 %v730, %v756
    %v758 = vpop.f32.mrf.mxu0
    %v759 = vadd.f32 %v730, %v758
    %760 = vdwg.mxu0
    %v761 = vadd.f32 %v179, %v757
    %v762 = vadd.f32 %v180, %v759
    %v763 = vld [vmem:[#allocation8] sm:$0x1]
    %v764 = vld [vmem:[#allocation9] sm:$0x1]
    %v765 = vsel %vm208, %v761, 0.0
    %766 = vadd.xlane.f32.xlu0 %v765
    %v767 = vpop.xlane.xlu0 %766
    %v768 = vsel %vm208, %v762, 0.0
    %769 = vadd.xlane.f32.xlu0 %v768
    %v770 = vpop.xlane.xlu0 %769
    %v771 = vrcp.pop 32.0
    %v772 = vmul.f32 32.0, %v771
    %v773 = vsub.f32 1.0, %v772
    %v774 = vmul.f32 %v771, %v773
    %v775 = vadd.f32 %v771, %v774
    %vm776 = vweird.f32 %v771
    %v777 = vsel %vm776, %v771, %v775
    %v778 = vmul.f32 %v767, %v777
    %v779 = vmul.f32 %v770, %v777
    %v780 = vsub.f32 %v761, %v778
    %v781 = vsub.f32 %v762, %v779
    %v782 = vmul.f32 %v780, %v780
    %v783 = vmul.f32 %v781, %v781
    %v784 = vsel %vm208, %v782, 0.0
    %785 = vadd.xlane.f32.xlu0 %v784
    %v786 = vpop.xlane.xlu0 %785
    %v787 = vsel %vm208, %v783, 0.0
    %788 = vadd.xlane.f32.xlu0 %v787
    %v789 = vpop.xlane.xlu0 %788
    %v790 = vmul.f32 %v786, %v777
    %v791 = vmul.f32 %v789, %v777
    %v792 = vadd.f32 %v790, 1e-05
    %v793 = vadd.f32 %v791, 1e-05
    %v794 = vrsqrt.pop %v792
    %v795 = vmul.f32 %v794, %v792
    %v796 = vmul.f32 %v795, %v794
    %v797 = vmul.f32 0.5, %v796
    %v798 = vsub.f32 1.5, %v797
    %v799 = vmul.f32 %v794, %v798
    %vm800 = vweird.f32 %v792
    %vm801 = vweird.f32 %v794
    %vm802 = vmor %vm800, %vm801
    %v803 = vsel %vm802, %v794, %v799
    %v804 = vrsqrt.pop %v793
    %v805 = vmul.f32 %v804, %v793
    %v806 = vmul.f32 %v805, %v804
    %v807 = vmul.f32 0.5, %v806
    %v808 = vsub.f32 1.5, %v807
    %v809 = vmul.f32 %v804, %v808
    %vm810 = vweird.f32 %v793
    %vm811 = vweird.f32 %v804
    %vm812 = vmor %vm810, %vm811
    %v813 = vsel %vm812, %v804, %v809
    %v814 = vmul.f32 %v780, %v803
    %v815 = vmul.f32 %v781, %v813
    %v817 = vperm.slane %v763, 0
    %v819 = vmul.f32 %v814, %v817
    %v820 = vmul.f32 %v815, %v817
    %v822 = vperm.slane %v764, 0
    %v824 = vadd.f32 %v819, %v822
    %v825 = vadd.f32 %v820, %v822
    %v826 = vld [vmem:[%s10] sm:$0xf]
    %v827 = vld [vmem:[%s10 + $0x4] sm:$0xf]
    %v828 = vld [vmem:[%s10 + $0x8] sm:$0xf]
    %v829 = vld [vmem:[%s10 + $0xc] sm:$0xf]
    %v830 = vpack.c.bf16 %v825, %v824
    %v831 = vld [vmem:[#allocation11] sm:$0x1]
    %v833 = vperm.slane %v831, 0
    %v839 = vunpack.c.l.b16 %v826
    %v840 = vunpack.c.l.b16 %v827
    %v841 = vunpack.c.l.b16 %v828
    %v842 = vunpack.c.l.b16 %v829
    %v843 = vpack.c.b16 %v840, %v839
    %v844 = vpack.c.b16 %v842, %v841
    %v848 = vsel %vm208, %v830, 0
    %850 = vmatpush.bf16.msra.mxu0 0
    %851 = vmatpush.bf16.msra.mxu0 0
    %852 = vmatpush.bf16.msra.mxu0 0
    %853 = vmatpush.bf16.msra.mxu0 0
    %854 = vmatpush.bf16.msra.mxu0 0
    %855 = vmatpush.bf16.msra.mxu0 0
    %856 = vmatpush.bf16.msra.mxu0 %v844
    %857 = vmatpush.bf16.msra.mxu0 %v843
    %858 = vmatmul.bf16.gmra.mxu0 %v848
    %v859 = vpop.f32.mrf.mxu0
    %v860 = vadd.f32 %v833, %v859
    %v861 = vpop.f32.mrf.mxu0
    %v862 = vadd.f32 %v833, %v861
    %863 = vdwg.mxu0
    %v864 = vmax.f32 %v860, 0.0
    %v865 = vmax.f32 %v862, 0.0
    %v866 = vld [vmem:[%s12] sm:$0xf]
    %v867 = vld [vmem:[%s12 + $0x4] sm:$0xf]
    %v868 = vld [vmem:[%s12 + $0x8] sm:$0xf]
    %v869 = vld [vmem:[%s12 + $0xc] sm:$0xf]
    %v870 = vld [vmem:[%s12 + $0x10] sm:$0xf]
    %v871 = vld [vmem:[%s12 + $0x14] sm:$0xf]
    %v872 = vld [vmem:[%s12 + $0x18] sm:$0xf]
    %v873 = vld [vmem:[%s12 + $0x1c] sm:$0xf]
    %v874 = vpack.c.bf16 %v865, %v864
    %v875 = vld [vmem:[#allocation12] sm:$0x1]
    %v877 = vperm.slane %v875, 0
    %v887 = vunpack.c.l.b16 %v866
    %v888 = vunpack.c.l.b16 %v867
    %v889 = vunpack.c.l.b16 %v868
    %v890 = vunpack.c.l.b16 %v869
    %v891 = vunpack.c.l.b16 %v870
    %v892 = vunpack.c.l.b16 %v871
    %v893 = vunpack.c.l.b16 %v872
    %v894 = vunpack.c.l.b16 %v873
    %v895 = vpack.c.b16 %v888, %v887
    %v896 = vpack.c.b16 %v890, %v889
    %v897 = vpack.c.b16 %v892, %v891
    %v898 = vpack.c.b16 %v894, %v893
    %vm903 = vcmask 523264
    %v905 = vsel %vm903, %v874, 0
    %907 = vmatpush.bf16.msra.mxu0 0
    %908 = vmatpush.bf16.msra.mxu0 0
    %909 = vmatpush.bf16.msra.mxu0 0
    %910 = vmatpush.bf16.msra.mxu0 0
    %911 = vmatpush.bf16.msra.mxu0 %v898
    %912 = vmatpush.bf16.msra.mxu0 %v897
    %913 = vmatpush.bf16.msra.mxu0 %v896
    %914 = vmatpush.bf16.msra.mxu0 %v895
    %915 = vmatmul.bf16.gmra.mxu0 %v905
    %v916 = vpop.f32.mrf.mxu0
    %v917 = vadd.f32 %v877, %v916
    %v918 = vpop.f32.mrf.mxu0
    %v919 = vadd.f32 %v877, %v918
    %920 = vdwg.mxu0
    %v921 = vadd.f32 %v824, %v917
    %v922 = vadd.f32 %v825, %v919
    %v923 = vld [vmem:[%s14] sm:$0x1]
    %v924 = vld [vmem:[#allocation14] sm:$0x1]
    %v925 = vsel %vm208, %v921, 0.0
    %926 = vadd.xlane.f32.xlu0 %v925
    %v927 = vpop.xlane.xlu0 %926
    %v928 = vsel %vm208, %v922, 0.0
    %929 = vadd.xlane.f32.xlu0 %v928
    %v930 = vpop.xlane.xlu0 %929
    %v931 = vmul.f32 %v927, %v777
    %v932 = vmul.f32 %v930, %v777
    %v933 = vsub.f32 %v921, %v931
    %v934 = vsub.f32 %v922, %v932
    %v935 = vmul.f32 %v933, %v933
    %v936 = vmul.f32 %v934, %v934
    %v937 = vsel %vm208, %v935, 0.0
    %938 = vadd.xlane.f32.xlu0 %v937
    %v939 = vpop.xlane.xlu0 %938
    %v940 = vsel %vm208, %v936, 0.0
    %941 = vadd.xlane.f32.xlu0 %v940
    %v942 = vpop.xlane.xlu0 %941
    %v943 = vmul.f32 %v939, %v777
    %v944 = vmul.f32 %v942, %v777
    %v945 = vadd.f32 %v943, 1e-05
    %v946 = vadd.f32 %v944, 1e-05
    %v947 = vrsqrt.pop %v945
    %v948 = vmul.f32 %v947, %v945
    %v949 = vmul.f32 %v948, %v947
    %v950 = vmul.f32 0.5, %v949
    %v951 = vsub.f32 1.5, %v950
    %v952 = vmul.f32 %v947, %v951
    %vm953 = vweird.f32 %v945
    %vm954 = vweird.f32 %v947
    %vm955 = vmor %vm953, %vm954
    %v956 = vsel %vm955, %v947, %v952
    %v957 = vrsqrt.pop %v946
    %v958 = vmul.f32 %v957, %v946
    %v959 = vmul.f32 %v958, %v957
    %v960 = vmul.f32 0.5, %v959
    %v961 = vsub.f32 1.5, %v960
    %v962 = vmul.f32 %v957, %v961
    %vm963 = vweird.f32 %v946
    %vm964 = vweird.f32 %v957
    %vm965 = vmor %vm963, %vm964
    %v966 = vsel %vm965, %v957, %v962
    %v967 = vmul.f32 %v933, %v956
    %v968 = vmul.f32 %v934, %v966
    %v970 = vperm.slane %v923, 0
    %v972 = vmul.f32 %v967, %v970
    %v973 = vmul.f32 %v968, %v970
    %v975 = vperm.slane %v924, 0
    %v977 = vadd.f32 %v972, %v975
    %v978 = vadd.f32 %v973, %v975
    %s979 = scalar_lea.vmem %s4, 16
    %v980 = vld [vmem:[%s979] sm:$0xf]
    %v981 = vld [vmem:[%s979 + $0x4] sm:$0xf]
    %v982 = vld [vmem:[%s979 + $0x8] sm:$0xf]
    %v983 = vld [vmem:[%s979 + $0xc] sm:$0xf]
    %v984 = vpack.c.bf16 %v978, %v977
    %s985 = scalar_lea.vmem [#allocation4], 1
    %v986 = vld [vmem:[%s985] sm:$0x1]
    %v988 = vperm.slane %v986, 0
    %v994 = vunpack.c.l.b16 %v980
    %v995 = vunpack.c.l.b16 %v981
    %v996 = vunpack.c.l.b16 %v982
    %v997 = vunpack.c.l.b16 %v983
    %v998 = vpack.c.b16 %v995, %v994
    %v999 = vpack.c.b16 %v997, %v996
    %v1003 = vsel %vm208, %v984, 0
    %1005 = vmatpush.bf16.msra.mxu0 0
    %1006 = vmatpush.bf16.msra.mxu0 0
    %1007 = vmatpush.bf16.msra.mxu0 0
    %1008 = vmatpush.bf16.msra.mxu0 0
    %1009 = vmatpush.bf16.msra.mxu0 0
    %1010 = vmatpush.bf16.msra.mxu0 0
    %1011 = vmatpush.bf16.msra.mxu0 %v999
    %1012 = vmatpush.bf16.msra.mxu0 %v998
    %1013 = vmatmul.bf16.gmra.mxu0 %v1003
    %v1014 = vpop.f32.mrf.mxu0
    %v1015 = vadd.f32 %v988, %v1014
    %v1016 = vpop.f32.mrf.mxu0
    %v1017 = vadd.f32 %v988, %v1016
    %1018 = vdwg.mxu0
    %v1019 = vpack.c.bf16 %v1015, %v1015
    %v1020 = vpack.c.bf16 %v1017, %v1017
    %v1022 = vunpack.c.l.b16 %v1019
    %v1023 = vpack.c.b16 %v1022, %v1022
    %1024 = vrot.lane.b32.xlu0 %v1023, 96
    %v1025 = vpop.permute.xlu0 %1024
    %v1027 = vsel %vm239, %v1019, 0
    %v1030 = vsel %vm239, %v1025, 0
    %1032 = vmatpush.bf16.xpose.msra.mxu0 0
    %1033 = vmatpush.bf16.xpose.msra.mxu0 0
    %1034 = vmatpush.bf16.xpose.msra.mxu0 0
    %1035 = vmatpush.bf16.xpose.msra.mxu0 0
    %1036 = vmatpush.bf16.xpose.msra.mxu0 0
    %1037 = vmatpush.bf16.xpose.msra.mxu0 0
    %1038 = vmatpush.bf16.xpose.msra.mxu0 0
    %1039 = vmatpush.bf16.xpose.msra.mxu0 %v1030
    %1040 = vmatmul.bf16.gmra.mxu0 %v1027
    %v1041 = vpop.f32.mrf.mxu0
    %v1042 = vadd.f32 %v230, %v1041
    %v1043 = vpop.f32.mrf.mxu0
    %1044 = vdwg.mxu0
    %v1046 = vunpack.c.l.b16 %v1020
    %v1047 = vpack.c.b16 %v1046, %v1046
    %1048 = vrot.lane.b32.xlu0 %v1047, 96
    %v1049 = vpop.permute.xlu0 %1048
    %v1051 = vsel %vm239, %v1020, 0
    %v1054 = vsel %vm239, %v1049, 0
    %1056 = vmatpush.bf16.xpose.msra.mxu0 0
    %1057 = vmatpush.bf16.xpose.msra.mxu0 0
    %1058 = vmatpush.bf16.xpose.msra.mxu0 0
    %1059 = vmatpush.bf16.xpose.msra.mxu0 0
    %1060 = vmatpush.bf16.xpose.msra.mxu0 0
    %1061 = vmatpush.bf16.xpose.msra.mxu0 0
    %1062 = vmatpush.bf16.xpose.msra.mxu0 0
    %1063 = vmatpush.bf16.xpose.msra.mxu0 %v1054
    %1064 = vmatmul.bf16.gmra.mxu0 %v1051
    %v1065 = vpop.f32.mrf.mxu0
    %v1066 = vadd.f32 %v231, %v1065
    %v1067 = vpop.f32.mrf.mxu0
    %1068 = vdwg.mxu0
    %v1069 = vsel %vm239, %v1042, -inf
    %1070 = vmax.xlane.f32.xlu0 %v1069
    %v1071 = vpop.xlane.xlu0 %1070
    %v1072 = vsel %vm239, %v1066, -inf
    %1073 = vmax.xlane.f32.xlu0 %v1072
    %v1074 = vpop.xlane.xlu0 %1073
    %v1075 = vsub.f32 %v1042, %v1071
    %v1076 = vsub.f32 %v1066, %v1074
    %v1077 = vmul.f32 %v1075, 1.442695
    %v1078 = vpow.pop %v1077
    %v1079 = vmul.f32 %v1076, 1.442695
    %v1080 = vpow.pop %v1079
    %v1081 = vsel %vm239, %v1078, 0.0
    %1082 = vadd.xlane.f32.xlu0 %v1081
    %v1083 = vpop.xlane.xlu0 %1082
    %v1084 = vsel %vm239, %v1080, 0.0
    %1085 = vadd.xlane.f32.xlu0 %v1084
    %v1086 = vpop.xlane.xlu0 %1085
    %v1087 = vrcp.pop %v1083
    %v1088 = vrcp.pop %v1086
    %v1089 = vmul.f32 %v1078, %v1087
    %v1090 = vmul.f32 %v1080, %v1088
    %v1091 = vpack.c.bf16 %v1089, %v1089
    %v1092 = vpack.c.bf16 %v1090, %v1090
    %1093 = vrot.lane.b32.xlu0 %v1023, 64
    %v1094 = vpop.permute.xlu0 %1093
    %v1096 = vsel %vm239, %v1091, 0
    %v1099 = vsel %vm312, %v1094, 0
    %1101 = vmatpush.bf16.msra.mxu0 0
    %1102 = vmatpush.bf16.msra.mxu0 0
    %1103 = vmatpush.bf16.msra.mxu0 0
    %1104 = vmatpush.bf16.msra.mxu0 0
    %1105 = vmatpush.bf16.msra.mxu0 0
    %1106 = vmatpush.bf16.msra.mxu0 0
    %1107 = vmatpush.bf16.msra.mxu0 0
    %1108 = vmatpush.bf16.msra.mxu0 %v1099
    %1109 = vmatmul.bf16.gmra.mxu0 %v1096
    %v1110 = vpop.f32.mrf.mxu0
    %v1111 = vadd.f32 0.0, %v1110
    %v1112 = vpop.f32.mrf.mxu0
    %1113 = vdwg.mxu0
    %1114 = vrot.lane.b32.xlu0 %v1047, 64
    %v1115 = vpop.permute.xlu0 %1114
    %v1117 = vsel %vm239, %v1092, 0
    %v1120 = vsel %vm312, %v1115, 0
    %1122 = vmatpush.bf16.msra.mxu0 0
    %1123 = vmatpush.bf16.msra.mxu0 0
    %1124 = vmatpush.bf16.msra.mxu0 0
    %1125 = vmatpush.bf16.msra.mxu0 0
    %1126 = vmatpush.bf16.msra.mxu0 0
    %1127 = vmatpush.bf16.msra.mxu0 0
    %1128 = vmatpush.bf16.msra.mxu0 0
    %1129 = vmatpush.bf16.msra.mxu0 %v1120
    %1130 = vmatmul.bf16.gmra.mxu0 %v1117
    %v1131 = vpop.f32.mrf.mxu0
    %v1132 = vadd.f32 0.0, %v1131
    %v1133 = vpop.f32.mrf.mxu0
    %1134 = vdwg.mxu0
    %1135 = vst.msk [vmem:[#allocation2] sm:$0xff] %vm239, %v1111
    %1136 = vst.msk [vmem:[#allocation2 + $0x8] sm:$0xff] %vm239, %v1132
    %1137 = vrot.lane.b32.xlu0 %v1023, 120
    %v1138 = vpop.permute.xlu0 %1137
    %1139 = vrot.lane.b32.xlu0 %v1023, 88
    %v1140 = vpop.permute.xlu0 %1139
    %v1142 = vsel %vm239, %v1138, 0
    %v1145 = vsel %vm239, %v1140, 0
    %1147 = vmatpush.bf16.xpose.msra.mxu0 0
    %1148 = vmatpush.bf16.xpose.msra.mxu0 0
    %1149 = vmatpush.bf16.xpose.msra.mxu0 0
    %1150 = vmatpush.bf16.xpose.msra.mxu0 0
    %1151 = vmatpush.bf16.xpose.msra.mxu0 0
    %1152 = vmatpush.bf16.xpose.msra.mxu0 0
    %1153 = vmatpush.bf16.xpose.msra.mxu0 0
    %1154 = vmatpush.bf16.xpose.msra.mxu0 %v1145
    %1155 = vmatmul.bf16.gmra.mxu0 %v1142
    %v1156 = vpop.f32.mrf.mxu0
    %v1157 = vadd.f32 %v230, %v1156
    %v1158 = vpop.f32.mrf.mxu0
    %1159 = vdwg.mxu0
    %1160 = vrot.lane.b32.xlu0 %v1047, 120
    %v1161 = vpop.permute.xlu0 %1160
    %1162 = vrot.lane.b32.xlu0 %v1047, 88
    %v1163 = vpop.permute.xlu0 %1162
    %v1165 = vsel %vm239, %v1161, 0
    %v1168 = vsel %vm239, %v1163, 0
    %1170 = vmatpush.bf16.xpose.msra.mxu0 0
    %1171 = vmatpush.bf16.xpose.msra.mxu0 0
    %1172 = vmatpush.bf16.xpose.msra.mxu0 0
    %1173 = vmatpush.bf16.xpose.msra.mxu0 0
    %1174 = vmatpush.bf16.xpose.msra.mxu0 0
    %1175 = vmatpush.bf16.xpose.msra.mxu0 0
    %1176 = vmatpush.bf16.xpose.msra.mxu0 0
    %1177 = vmatpush.bf16.xpose.msra.mxu0 %v1168
    %1178 = vmatmul.bf16.gmra.mxu0 %v1165
    %v1179 = vpop.f32.mrf.mxu0
    %v1180 = vadd.f32 %v231, %v1179
    %v1181 = vpop.f32.mrf.mxu0
    %1182 = vdwg.mxu0
    %v1183 = vsel %vm239, %v1157, -inf
    %1184 = vmax.xlane.f32.xlu0 %v1183
    %v1185 = vpop.xlane.xlu0 %1184
    %v1186 = vsel %vm239, %v1180, -inf
    %1187 = vmax.xlane.f32.xlu0 %v1186
    %v1188 = vpop.xlane.xlu0 %1187
    %v1189 = vsub.f32 %v1157, %v1185
    %v1190 = vsub.f32 %v1180, %v1188
    %v1191 = vmul.f32 %v1189, 1.442695
    %v1192 = vpow.pop %v1191
    %v1193 = vmul.f32 %v1190, 1.442695
    %v1194 = vpow.pop %v1193
    %v1195 = vsel %vm239, %v1192, 0.0
    %1196 = vadd.xlane.f32.xlu0 %v1195
    %v1197 = vpop.xlane.xlu0 %1196
    %v1198 = vsel %vm239, %v1194, 0.0
    %1199 = vadd.xlane.f32.xlu0 %v1198
    %v1200 = vpop.xlane.xlu0 %1199
    %v1201 = vrcp.pop %v1197
    %v1202 = vrcp.pop %v1200
    %v1203 = vmul.f32 %v1192, %v1201
    %v1204 = vmul.f32 %v1194, %v1202
    %v1205 = vpack.c.bf16 %v1203, %v1203
    %v1206 = vpack.c.bf16 %v1204, %v1204
    %1207 = vrot.lane.b32.xlu0 %v1023, 56
    %v1208 = vpop.permute.xlu0 %1207
    %v1210 = vsel %vm239, %v1205, 0
    %v1213 = vsel %vm312, %v1208, 0
    %1215 = vmatpush.bf16.msra.mxu0 0
    %1216 = vmatpush.bf16.msra.mxu0 0
    %1217 = vmatpush.bf16.msra.mxu0 0
    %1218 = vmatpush.bf16.msra.mxu0 0
    %1219 = vmatpush.bf16.msra.mxu0 0
    %1220 = vmatpush.bf16.msra.mxu0 0
    %1221 = vmatpush.bf16.msra.mxu0 0
    %1222 = vmatpush.bf16.msra.mxu0 %v1213
    %1223 = vmatmul.bf16.gmra.mxu0 %v1210
    %v1224 = vpop.f32.mrf.mxu0
    %v1225 = vadd.f32 0.0, %v1224
    %v1226 = vpop.f32.mrf.mxu0
    %1227 = vdwg.mxu0
    %1228 = vrot.lane.b32.xlu0 %v1047, 56
    %v1229 = vpop.permute.xlu0 %1228
    %v1231 = vsel %vm239, %v1206, 0
    %v1234 = vsel %vm312, %v1229, 0
    %1236 = vmatpush.bf16.msra.mxu0 0
    %1237 = vmatpush.bf16.msra.mxu0 0
    %1238 = vmatpush.bf16.msra.mxu0 0
    %1239 = vmatpush.bf16.msra.mxu0 0
    %1240 = vmatpush.bf16.msra.mxu0 0
    %1241 = vmatpush.bf16.msra.mxu0 0
    %1242 = vmatpush.bf16.msra.mxu0 0
    %1243 = vmatpush.bf16.msra.mxu0 %v1234
    %1244 = vmatmul.bf16.gmra.mxu0 %v1231
    %v1245 = vpop.f32.mrf.mxu0
    %v1246 = vadd.f32 0.0, %v1245
    %v1247 = vpop.f32.mrf.mxu0
    %1248 = vdwg.mxu0
    %1251 = vrot.lane.b32.xlu0 %v1225, 8
    %v1252 = vpop.permute.xlu0 %1251
    %1253 = vrot.lane.b32.xlu0 %v1246, 8
    %v1254 = vpop.permute.xlu0 %1253
    %1257 = vst.msk [vmem:[#allocation2] sm:$0xff] %vm472, %v1252
    %1258 = vst.msk [vmem:[#allocation2 + $0x8] sm:$0xff] %vm472, %v1254
    %1259 = vrot.lane.b32.xlu0 %v1023, 112
    %v1260 = vpop.permute.xlu0 %1259
    %1261 = vrot.lane.b32.xlu0 %v1023, 80
    %v1262 = vpop.permute.xlu0 %1261
    %v1264 = vsel %vm239, %v1260, 0
    %v1267 = vsel %vm239, %v1262, 0
    %1269 = vmatpush.bf16.xpose.msra.mxu0 0
    %1270 = vmatpush.bf16.xpose.msra.mxu0 0
    %1271 = vmatpush.bf16.xpose.msra.mxu0 0
    %1272 = vmatpush.bf16.xpose.msra.mxu0 0
    %1273 = vmatpush.bf16.xpose.msra.mxu0 0
    %1274 = vmatpush.bf16.xpose.msra.mxu0 0
    %1275 = vmatpush.bf16.xpose.msra.mxu0 0
    %1276 = vmatpush.bf16.xpose.msra.mxu0 %v1267
    %1277 = vmatmul.bf16.gmra.mxu0 %v1264
    %v1278 = vpop.f32.mrf.mxu0
    %v1279 = vadd.f32 %v230, %v1278
    %v1280 = vpop.f32.mrf.mxu0
    %1281 = vdwg.mxu0
    %1282 = vrot.lane.b32.xlu0 %v1047, 112
    %v1283 = vpop.permute.xlu0 %1282
    %1284 = vrot.lane.b32.xlu0 %v1047, 80
    %v1285 = vpop.permute.xlu0 %1284
    %v1287 = vsel %vm239, %v1283, 0
    %v1290 = vsel %vm239, %v1285, 0
    %1292 = vmatpush.bf16.xpose.msra.mxu0 0
    %1293 = vmatpush.bf16.xpose.msra.mxu0 0
    %1294 = vmatpush.bf16.xpose.msra.mxu0 0
    %1295 = vmatpush.bf16.xpose.msra.mxu0 0
    %1296 = vmatpush.bf16.xpose.msra.mxu0 0
    %1297 = vmatpush.bf16.xpose.msra.mxu0 0
    %1298 = vmatpush.bf16.xpose.msra.mxu0 0
    %1299 = vmatpush.bf16.xpose.msra.mxu0 %v1290
    %1300 = vmatmul.bf16.gmra.mxu0 %v1287
    %v1301 = vpop.f32.mrf.mxu0
    %v1302 = vadd.f32 %v231, %v1301
    %v1303 = vpop.f32.mrf.mxu0
    %1304 = vdwg.mxu0
    %v1305 = vsel %vm239, %v1279, -inf
    %1306 = vmax.xlane.f32.xlu0 %v1305
    %v1307 = vpop.xlane.xlu0 %1306
    %v1308 = vsel %vm239, %v1302, -inf
    %1309 = vmax.xlane.f32.xlu0 %v1308
    %v1310 = vpop.xlane.xlu0 %1309
    %v1311 = vsub.f32 %v1279, %v1307
    %v1312 = vsub.f32 %v1302, %v1310
    %v1313 = vmul.f32 %v1311, 1.442695
    %v1314 = vpow.pop %v1313
    %v1315 = vmul.f32 %v1312, 1.442695
    %v1316 = vpow.pop %v1315
    %v1317 = vsel %vm239, %v1314, 0.0
    %1318 = vadd.xlane.f32.xlu0 %v1317
    %v1319 = vpop.xlane.xlu0 %1318
    %v1320 = vsel %vm239, %v1316, 0.0
    %1321 = vadd.xlane.f32.xlu0 %v1320
    %v1322 = vpop.xlane.xlu0 %1321
    %v1323 = vrcp.pop %v1319
    %v1324 = vrcp.pop %v1322
    %v1325 = vmul.f32 %v1314, %v1323
    %v1326 = vmul.f32 %v1316, %v1324
    %v1327 = vpack.c.bf16 %v1325, %v1325
    %v1328 = vpack.c.bf16 %v1326, %v1326
    %1329 = vrot.lane.b32.xlu0 %v1023, 48
    %v1330 = vpop.permute.xlu0 %1329
    %v1332 = vsel %vm239, %v1327, 0
    %v1335 = vsel %vm312, %v1330, 0
    %1337 = vmatpush.bf16.msra.mxu0 0
    %1338 = vmatpush.bf16.msra.mxu0 0
    %1339 = vmatpush.bf16.msra.mxu0 0
    %1340 = vmatpush.bf16.msra.mxu0 0
    %1341 = vmatpush.bf16.msra.mxu0 0
    %1342 = vmatpush.bf16.msra.mxu0 0
    %1343 = vmatpush.bf16.msra.mxu0 0
    %1344 = vmatpush.bf16.msra.mxu0 %v1335
    %1345 = vmatmul.bf16.gmra.mxu0 %v1332
    %v1346 = vpop.f32.mrf.mxu0
    %v1347 = vadd.f32 0.0, %v1346
    %v1348 = vpop.f32.mrf.mxu0
    %1349 = vdwg.mxu0
    %1350 = vrot.lane.b32.xlu0 %v1047, 48
    %v1351 = vpop.permute.xlu0 %1350
    %v1353 = vsel %vm239, %v1328, 0
    %v1356 = vsel %vm312, %v1351, 0
    %1358 = vmatpush.bf16.msra.mxu0 0
    %1359 = vmatpush.bf16.msra.mxu0 0
    %1360 = vmatpush.bf16.msra.mxu0 0
    %1361 = vmatpush.bf16.msra.mxu0 0
    %1362 = vmatpush.bf16.msra.mxu0 0
    %1363 = vmatpush.bf16.msra.mxu0 0
    %1364 = vmatpush.bf16.msra.mxu0 0
    %1365 = vmatpush.bf16.msra.mxu0 %v1356
    %1366 = vmatmul.bf16.gmra.mxu0 %v1353
    %v1367 = vpop.f32.mrf.mxu0
    %v1368 = vadd.f32 0.0, %v1367
    %v1369 = vpop.f32.mrf.mxu0
    %1370 = vdwg.mxu0
    %1373 = vrot.lane.b32.xlu0 %v1347, 16
    %v1374 = vpop.permute.xlu0 %1373
    %1375 = vrot.lane.b32.xlu0 %v1368, 16
    %v1376 = vpop.permute.xlu0 %1375
    %1379 = vst.msk [vmem:[#allocation2] sm:$0xff] %vm595, %v1374
    %1380 = vst.msk [vmem:[#allocation2 + $0x8] sm:$0xff] %vm595, %v1376
    %1381 = vrot.lane.b32.xlu0 %v1023, 104
    %v1382 = vpop.permute.xlu0 %1381
    %1383 = vrot.lane.b32.xlu0 %v1023, 72
    %v1384 = vpop.permute.xlu0 %1383
    %v1386 = vsel %vm239, %v1382, 0
    %v1389 = vsel %vm239, %v1384, 0
    %1391 = vmatpush.bf16.xpose.msra.mxu0 0
    %1392 = vmatpush.bf16.xpose.msra.mxu0 0
    %1393 = vmatpush.bf16.xpose.msra.mxu0 0
    %1394 = vmatpush.bf16.xpose.msra.mxu0 0
    %1395 = vmatpush.bf16.xpose.msra.mxu0 0
    %1396 = vmatpush.bf16.xpose.msra.mxu0 0
    %1397 = vmatpush.bf16.xpose.msra.mxu0 0
    %1398 = vmatpush.bf16.xpose.msra.mxu0 %v1389
    %1399 = vmatmul.bf16.gmra.mxu0 %v1386
    %v1400 = vpop.f32.mrf.mxu0
    %v1401 = vadd.f32 %v230, %v1400
    %v1402 = vpop.f32.mrf.mxu0
    %1403 = vdwg.mxu0
    %1404 = vrot.lane.b32.xlu0 %v1047, 104
    %v1405 = vpop.permute.xlu0 %1404
    %1406 = vrot.lane.b32.xlu0 %v1047, 72
    %v1407 = vpop.permute.xlu0 %1406
    %v1409 = vsel %vm239, %v1405, 0
    %v1412 = vsel %vm239, %v1407, 0
    %1414 = vmatpush.bf16.xpose.msra.mxu0 0
    %1415 = vmatpush.bf16.xpose.msra.mxu0 0
    %1416 = vmatpush.bf16.xpose.msra.mxu0 0
    %1417 = vmatpush.bf16.xpose.msra.mxu0 0
    %1418 = vmatpush.bf16.xpose.msra.mxu0 0
    %1419 = vmatpush.bf16.xpose.msra.mxu0 0
    %1420 = vmatpush.bf16.xpose.msra.mxu0 0
    %1421 = vmatpush.bf16.xpose.msra.mxu0 %v1412
    %1422 = vmatmul.bf16.gmra.mxu0 %v1409
    %v1423 = vpop.f32.mrf.mxu0
    %v1424 = vadd.f32 %v231, %v1423
    %v1425 = vpop.f32.mrf.mxu0
    %1426 = vdwg.mxu0
    %v1427 = vsel %vm239, %v1401, -inf
    %1428 = vmax.xlane.f32.xlu0 %v1427
    %v1429 = vpop.xlane.xlu0 %1428
    %v1430 = vsel %vm239, %v1424, -inf
    %1431 = vmax.xlane.f32.xlu0 %v1430
    %v1432 = vpop.xlane.xlu0 %1431
    %v1433 = vsub.f32 %v1401, %v1429
    %v1434 = vsub.f32 %v1424, %v1432
    %v1435 = vmul.f32 %v1433, 1.442695
    %v1436 = vpow.pop %v1435
    %v1437 = vmul.f32 %v1434, 1.442695
    %v1438 = vpow.pop %v1437
    %v1439 = vsel %vm239, %v1436, 0.0
    %1440 = vadd.xlane.f32.xlu0 %v1439
    %v1441 = vpop.xlane.xlu0 %1440
    %v1442 = vsel %vm239, %v1438, 0.0
    %1443 = vadd.xlane.f32.xlu0 %v1442
    %v1444 = vpop.xlane.xlu0 %1443
    %v1445 = vrcp.pop %v1441
    %v1446 = vrcp.pop %v1444
    %v1447 = vmul.f32 %v1436, %v1445
    %v1448 = vmul.f32 %v1438, %v1446
    %v1449 = vpack.c.bf16 %v1447, %v1447
    %v1450 = vpack.c.bf16 %v1448, %v1448
    %1451 = vrot.lane.b32.xlu0 %v1023, 40
    %v1452 = vpop.permute.xlu0 %1451
    %v1454 = vsel %vm239, %v1449, 0
    %v1457 = vsel %vm312, %v1452, 0
    %1459 = vmatpush.bf16.msra.mxu0 0
    %1460 = vmatpush.bf16.msra.mxu0 0
    %1461 = vmatpush.bf16.msra.mxu0 0
    %1462 = vmatpush.bf16.msra.mxu0 0
    %1463 = vmatpush.bf16.msra.mxu0 0
    %1464 = vmatpush.bf16.msra.mxu0 0
    %1465 = vmatpush.bf16.msra.mxu0 0
    %1466 = vmatpush.bf16.msra.mxu0 %v1457
    %1467 = vmatmul.bf16.gmra.mxu0 %v1454
    %v1468 = vpop.f32.mrf.mxu0
    %v1469 = vadd.f32 0.0, %v1468
    %v1470 = vpop.f32.mrf.mxu0
    %1471 = vdwg.mxu0
    %1472 = vrot.lane.b32.xlu0 %v1047, 40
    %v1473 = vpop.permute.xlu0 %1472
    %v1475 = vsel %vm239, %v1450, 0
    %v1478 = vsel %vm312, %v1473, 0
    %1480 = vmatpush.bf16.msra.mxu0 0
    %1481 = vmatpush.bf16.msra.mxu0 0
    %1482 = vmatpush.bf16.msra.mxu0 0
    %1483 = vmatpush.bf16.msra.mxu0 0
    %1484 = vmatpush.bf16.msra.mxu0 0
    %1485 = vmatpush.bf16.msra.mxu0 0
    %1486 = vmatpush.bf16.msra.mxu0 0
    %1487 = vmatpush.bf16.msra.mxu0 %v1478
    %1488 = vmatmul.bf16.gmra.mxu0 %v1475
    %v1489 = vpop.f32.mrf.mxu0
    %v1490 = vadd.f32 0.0, %v1489
    %v1491 = vpop.f32.mrf.mxu0
    %1492 = vdwg.mxu0
    %1495 = vrot.lane.b32.xlu0 %v1469, 24
    %v1496 = vpop.permute.xlu0 %1495
    %1497 = vrot.lane.b32.xlu0 %v1490, 24
    %v1498 = vpop.permute.xlu0 %1497
    %1501 = vst.msk [vmem:[#allocation2] sm:$0xff] %vm718, %v1496
    %1502 = vst.msk [vmem:[#allocation2 + $0x8] sm:$0xff] %vm718, %v1498
    %v1503 = vld [vmem:[#allocation2] sm:$0xff]
    %v1504 = vld [vmem:[#allocation2 + $0x8] sm:$0xff]
    %s1505 = scalar_lea.vmem %s6, 16
    %v1506 = vld [vmem:[%s1505] sm:$0xf]
    %v1507 = vld [vmem:[%s1505 + $0x4] sm:$0xf]
    %v1508 = vld [vmem:[%s1505 + $0x8] sm:$0xf]
    %v1509 = vld [vmem:[%s1505 + $0xc] sm:$0xf]
    %v1510 = vpack.c.bf16 %v1504, %v1503
    %s1511 = scalar_lea.vmem [#allocation6], 1
    %v1512 = vld [vmem:[%s1511] sm:$0x1]
    %v1514 = vperm.slane %v1512, 0
    %v1520 = vunpack.c.l.b16 %v1506
    %v1521 = vunpack.c.l.b16 %v1507
    %v1522 = vunpack.c.l.b16 %v1508
    %v1523 = vunpack.c.l.b16 %v1509
    %v1524 = vpack.c.b16 %v1521, %v1520
    %v1525 = vpack.c.b16 %v1523, %v1522
    %v1529 = vsel %vm208, %v1510, 0
    %1531 = vmatpush.bf16.msra.mxu0 0
    %1532 = vmatpush.bf16.msra.mxu0 0
    %1533 = vmatpush.bf16.msra.mxu0 0
    %1534 = vmatpush.bf16.msra.mxu0 0
    %1535 = vmatpush.bf16.msra.mxu0 0
    %1536 = vmatpush.bf16.msra.mxu0 0
    %1537 = vmatpush.bf16.msra.mxu0 %v1525
    %1538 = vmatpush.bf16.msra.mxu0 %v1524
    %1539 = vmatmul.bf16.gmra.mxu0 %v1529
    %v1540 = vpop.f32.mrf.mxu0
    %v1541 = vadd.f32 %v1514, %v1540
    %v1542 = vpop.f32.mrf.mxu0
    %v1543 = vadd.f32 %v1514, %v1542
    %1544 = vdwg.mxu0
    %v1545 = vadd.f32 %v977, %v1541
    %v1546 = vadd.f32 %v978, %v1543
    %s1547 = scalar_lea.vmem [#allocation8], 1
    %v1548 = vld [vmem:[%s1547] sm:$0x1]
    %s1549 = scalar_lea.vmem [#allocation9], 1
    %v1550 = vld [vmem:[%s1549] sm:$0x1]
    %v1551 = vsel %vm208, %v1545, 0.0
    %1552 = vadd.xlane.f32.xlu0 %v1551
    %v1553 = vpop.xlane.xlu0 %1552
    %v1554 = vsel %vm208, %v1546, 0.0
    %1555 = vadd.xlane.f32.xlu0 %v1554
    %v1556 = vpop.xlane.xlu0 %1555
    %v1557 = vmul.f32 %v1553, %v777
    %v1558 = vmul.f32 %v1556, %v777
    %v1559 = vsub.f32 %v1545, %v1557
    %v1560 = vsub.f32 %v1546, %v1558
    %v1561 = vmul.f32 %v1559, %v1559
    %v1562 = vmul.f32 %v1560, %v1560
    %v1563 = vsel %vm208, %v1561, 0.0
    %1564 = vadd.xlane.f32.xlu0 %v1563
    %v1565 = vpop.xlane.xlu0 %1564
    %v1566 = vsel %vm208, %v1562, 0.0
    %1567 = vadd.xlane.f32.xlu0 %v1566
    %v1568 = vpop.xlane.xlu0 %1567
    %v1569 = vmul.f32 %v1565, %v777
    %v1570 = vmul.f32 %v1568, %v777
    %v1571 = vadd.f32 %v1569, 1e-05
    %v1572 = vadd.f32 %v1570, 1e-05
    %v1573 = vrsqrt.pop %v1571
    %v1574 = vmul.f32 %v1573, %v1571
    %v1575 = vmul.f32 %v1574, %v1573
    %v1576 = vmul.f32 0.5, %v1575
    %v1577 = vsub.f32 1.5, %v1576
    %v1578 = vmul.f32 %v1573, %v1577
    %vm1579 = vweird.f32 %v1571
    %vm1580 = vweird.f32 %v1573
    %vm1581 = vmor %vm1579, %vm1580
    %v1582 = vsel %vm1581, %v1573, %v1578
    %v1583 = vrsqrt.pop %v1572
    %v1584 = vmul.f32 %v1583, %v1572
    %v1585 = vmul.f32 %v1584, %v1583
    %v1586 = vmul.f32 0.5, %v1585
    %v1587 = vsub.f32 1.5, %v1586
    %v1588 = vmul.f32 %v1583, %v1587
    %vm1589 = vweird.f32 %v1572
    %vm1590 = vweird.f32 %v1583
    %vm1591 = vmor %vm1589, %vm1590
    %v1592 = vsel %vm1591, %v1583, %v1588
    %v1593 = vmul.f32 %v1559, %v1582
    %v1594 = vmul.f32 %v1560, %v1592
    %v1596 = vperm.slane %v1548, 0
    %v1598 = vmul.f32 %v1593, %v1596
    %v1599 = vmul.f32 %v1594, %v1596
    %v1601 = vperm.slane %v1550, 0
    %v1603 = vadd.f32 %v1598, %v1601
    %v1604 = vadd.f32 %v1599, %v1601
    %s1605 = scalar_lea.vmem %s10, 16
    %v1606 = vld [vmem:[%s1605] sm:$0xf]
    %v1607 = vld [vmem:[%s1605 + $0x4] sm:$0xf]
    %v1608 = vld [vmem:[%s1605 + $0x8] sm:$0xf]
    %v1609 = vld [vmem:[%s1605 + $0xc] sm:$0xf]
    %v1610 = vpack.c.bf16 %v1604, %v1603
    %s1611 = scalar_lea.vmem [#allocation11], 1
    %v1612 = vld [vmem:[%s1611] sm:$0x1]
    %v1614 = vperm.slane %v1612, 0
    %v1620 = vunpack.c.l.b16 %v1606
    %v1621 = vunpack.c.l.b16 %v1607
    %v1622 = vunpack.c.l.b16 %v1608
    %v1623 = vunpack.c.l.b16 %v1609
    %v1624 = vpack.c.b16 %v1621, %v1620
    %v1625 = vpack.c.b16 %v1623, %v1622
    %v1629 = vsel %vm208, %v1610, 0
    %1631 = vmatpush.bf16.msra.mxu0 0
    %1632 = vmatpush.bf16.msra.mxu0 0
    %1633 = vmatpush.bf16.msra.mxu0 0
    %1634 = vmatpush.bf16.msra.mxu0 0
    %1635 = vmatpush.bf16.msra.mxu0 0
    %1636 = vmatpush.bf16.msra.mxu0 0
    %1637 = vmatpush.bf16.msra.mxu0 %v1625
    %1638 = vmatpush.bf16.msra.mxu0 %v1624
    %1639 = vmatmul.bf16.gmra.mxu0 %v1629
    %v1640 = vpop.f32.mrf.mxu0
    %v1641 = vadd.f32 %v1614, %v1640
    %v1642 = vpop.f32.mrf.mxu0
    %v1643 = vadd.f32 %v1614, %v1642
    %1644 = vdwg.mxu0
    %v1645 = vmax.f32 %v1641, 0.0
    %v1646 = vmax.f32 %v1643, 0.0
    %s1647 = scalar_lea.vmem %s12, 32
    %v1648 = vld [vmem:[%s1647] sm:$0xf]
    %v1649 = vld [vmem:[%s1647 + $0x4] sm:$0xf]
    %v1650 = vld [vmem:[%s1647 + $0x8] sm:$0xf]
    %v1651 = vld [vmem:[%s1647 + $0xc] sm:$0xf]
    %v1652 = vld [vmem:[%s1647 + $0x10] sm:$0xf]
    %v1653 = vld [vmem:[%s1647 + $0x14] sm:$0xf]
    %v1654 = vld [vmem:[%s1647 + $0x18] sm:$0xf]
    %v1655 = vld [vmem:[%s1647 + $0x1c] sm:$0xf]
    %v1656 = vpack.c.bf16 %v1646, %v1645
    %s1657 = scalar_lea.vmem [#allocation12], 1
    %v1658 = vld [vmem:[%s1657] sm:$0x1]
    %v1660 = vperm.slane %v1658, 0
    %v1670 = vunpack.c.l.b16 %v1648
    %v1671 = vunpack.c.l.b16 %v1649
    %v1672 = vunpack.c.l.b16 %v1650
    %v1673 = vunpack.c.l.b16 %v1651
    %v1674 = vunpack.c.l.b16 %v1652
    %v1675 = vunpack.c.l.b16 %v1653
    %v1676 = vunpack.c.l.b16 %v1654
    %v1677 = vunpack.c.l.b16 %v1655
    %v1678 = vpack.c.b16 %v1671, %v1670
    %v1679 = vpack.c.b16 %v1673, %v1672
    %v1680 = vpack.c.b16 %v1675, %v1674
    %v1681 = vpack.c.b16 %v1677, %v1676
    %v1687 = vsel %vm903, %v1656, 0
    %1689 = vmatpush.bf16.msra.mxu0 0
    %1690 = vmatpush.bf16.msra.mxu0 0
    %1691 = vmatpush.bf16.msra.mxu0 0
    %1692 = vmatpush.bf16.msra.mxu0 0
    %1693 = vmatpush.bf16.msra.mxu0 %v1681
    %1694 = vmatpush.bf16.msra.mxu0 %v1680
    %1695 = vmatpush.bf16.msra.mxu0 %v1679
    %1696 = vmatpush.bf16.msra.mxu0 %v1678
    %1697 = vmatmul.bf16.gmra.mxu0 %v1687
    %v1698 = vpop.f32.mrf.mxu0
    %v1699 = vadd.f32 %v1660, %v1698
    %v1700 = vpop.f32.mrf.mxu0
    %v1701 = vadd.f32 %v1660, %v1700
    %1702 = vdwg.mxu0
    %v1703 = vadd.f32 %v1603, %v1699
    %v1704 = vadd.f32 %v1604, %v1701
    %s1705 = scalar_lea.vmem %s14, 1
    %v1706 = vld [vmem:[%s1705] sm:$0x1]
    %s1707 = scalar_lea.vmem [#allocation14], 1
    %v1708 = vld [vmem:[%s1707] sm:$0x1]
    %v1709 = vsel %vm208, %v1703, 0.0
    %1710 = vadd.xlane.f32.xlu0 %v1709
    %v1711 = vpop.xlane.xlu0 %1710
    %v1712 = vsel %vm208, %v1704, 0.0
    %1713 = vadd.xlane.f32.xlu0 %v1712
    %v1714 = vpop.xlane.xlu0 %1713
    %v1715 = vmul.f32 %v1711, %v777
    %v1716 = vmul.f32 %v1714, %v777
    %v1717 = vsub.f32 %v1703, %v1715
    %v1718 = vsub.f32 %v1704, %v1716
    %v1719 = vmul.f32 %v1717, %v1717
    %v1720 = vmul.f32 %v1718, %v1718
    %v1721 = vsel %vm208, %v1719, 0.0
    %1722 = vadd.xlane.f32.xlu0 %v1721
    %v1723 = vpop.xlane.xlu0 %1722
    %v1724 = vsel %vm208, %v1720, 0.0
    %1725 = vadd.xlane.f32.xlu0 %v1724
    %v1726 = vpop.xlane.xlu0 %1725
    %v1727 = vmul.f32 %v1723, %v777
    %v1728 = vmul.f32 %v1726, %v777
    %v1729 = vadd.f32 %v1727, 1e-05
    %v1730 = vadd.f32 %v1728, 1e-05
    %v1731 = vrsqrt.pop %v1729
    %v1732 = vmul.f32 %v1731, %v1729
    %v1733 = vmul.f32 %v1732, %v1731
    %v1734 = vmul.f32 0.5, %v1733
    %v1735 = vsub.f32 1.5, %v1734
    %v1736 = vmul.f32 %v1731, %v1735
    %vm1737 = vweird.f32 %v1729
    %vm1738 = vweird.f32 %v1731
    %vm1739 = vmor %vm1737, %vm1738
    %v1740 = vsel %vm1739, %v1731, %v1736
    %v1741 = vrsqrt.pop %v1730
    %v1742 = vmul.f32 %v1741, %v1730
    %v1743 = vmul.f32 %v1742, %v1741
    %v1744 = vmul.f32 0.5, %v1743
    %v1745 = vsub.f32 1.5, %v1744
    %v1746 = vmul.f32 %v1741, %v1745
    %vm1747 = vweird.f32 %v1730
    %vm1748 = vweird.f32 %v1741
    %vm1749 = vmor %vm1747, %vm1748
    %v1750 = vsel %vm1749, %v1741, %v1746
    %v1751 = vmul.f32 %v1717, %v1740
    %v1752 = vmul.f32 %v1718, %v1750
    %v1754 = vperm.slane %v1706, 0
    %v1756 = vmul.f32 %v1751, %v1754
    %v1757 = vmul.f32 %v1752, %v1754
    %v1759 = vperm.slane %v1708, 0
    %v1761 = vadd.f32 %v1756, %v1759
    %v1762 = vadd.f32 %v1757, %v1759
    %v1763 = vld [vmem:[%s2] sm:$0xff]
    %v1764 = vld [vmem:[%s2 + $0x8] sm:$0xff]
    %1766 = vset.pattern.permute.xlu0 0
    %1767 = vperm.xlu0 %1766, %v1763
    %v1768 = vpop.permute.xlu0 %1767
    %1771 = vset.pattern.permute.xlu0 0
    %1772 = vperm.xlu0 %1771, %v1764
    %v1773 = vpop.permute.xlu0 %1772
    %v1775 = vmul.f32 %v1761, %v1768
    %v1776 = vmul.f32 %v1762, %v1773
    %v1777 = vsel %vm208, %v1775, 0.0
    %v1778 = vrot.slane %v1777, 4
    %v1779 = vadd.f32 %v1777, %v1778
    %v1780 = vrot.slane %v1779, 2
    %v1781 = vadd.f32 %v1779, %v1780
    %v1782 = vrot.slane %v1781, 1
    %v1783 = vadd.f32 %v1781, %v1782
    %v1784 = vsel %vm208, %v1776, 0.0
    %v1785 = vrot.slane %v1784, 4
    %v1786 = vadd.f32 %v1784, %v1785
    %v1787 = vrot.slane %v1786, 2
    %v1788 = vadd.f32 %v1786, %v1787
    %v1789 = vrot.slane %v1788, 1
    %v1790 = vadd.f32 %v1788, %v1789
    %vm1791 = vcmask 7168
    %v1792 = vsel %vm1791, %v1763, 0.0
    %v1793 = vrot.slane %v1792, 4
    %v1794 = vadd.f32 %v1792, %v1793
    %v1795 = vrot.slane %v1794, 2
    %v1796 = vadd.f32 %v1794, %v1795
    %v1797 = vrot.slane %v1796, 1
    %v1798 = vadd.f32 %v1796, %v1797
    %v1799 = vsel %vm1791, %v1764, 0.0
    %v1800 = vrot.slane %v1799, 4
    %v1801 = vadd.f32 %v1799, %v1800
    %v1802 = vrot.slane %v1801, 2
    %v1803 = vadd.f32 %v1801, %v1802
    %v1804 = vrot.slane %v1803, 1
    %v1805 = vadd.f32 %v1803, %v1804
    %v1806 = vmax.f32 %v1798, 1.0
    %v1807 = vmax.f32 %v1805, 1.0
    %v1808 = vrcp.pop %v1806
    %v1809 = vrcp.pop %v1807
    %1811 = vset.pattern.permute.xlu0 0
    %1812 = vperm.xlu0 %1811, %v1808
    %v1813 = vpop.permute.xlu0 %1812
    %1816 = vset.pattern.permute.xlu0 0
    %1817 = vperm.xlu0 %1816, %v1809
    %v1818 = vpop.permute.xlu0 %1817
    %v1820 = vmul.f32 %v1783, %v1813
    %v1821 = vmul.f32 %v1790, %v1818
    %v1822 = vld [vmem:[%s16] sm:$0x1]
    %v1823 = vmul.f32 %v1820, %v1822
    %v1824 = vmul.f32 %v1821, %v1822
    %vm1825 = vcmask 253952
    %v1826 = vsel %vm1825, %v1823, 0.0
    %1827 = vadd.xlane.f32.xlu0 %v1826
    %v1828 = vpop.xlane.xlu0 %1827
    %v1829 = vsel %vm1825, %v1824, 0.0
    %1830 = vadd.xlane.f32.xlu0 %v1829
    %v1831 = vpop.xlane.xlu0 %1830
    %v1832 = vld [vmem:[#allocation3] sm:$0x1]
    %v1834 = vperm.slane %v1832, 0
    %v1835 = vlaneseq
    %v1836 = vshrl.u32 %v1835, 7
    %1838 = vset.pattern.permute.xlu0 %v1836
    %1839 = vperm.xlu0 %1838, %v1834
    %v1840 = vpop.permute.xlu0 %1839
    %v1842 = vadd.f32 %v1828, %v1840
    %v1843 = vadd.f32 %v1831, %v1840
    %v1846 = vrot.slane %v1843, 7
    %vm1847 = vcmask 1041409
    %v1848 = vsel %vm1847, %v1846, %v1842
    %vm1850 = vcmask 1024
    %1851 = vst.msk [vmem:[%s18] sm:$0x3] %vm1850, %v1848
    // Predicated region
    $region102: #{classifier_transformer_forward.1} parent=1 // pred_check
      _
    $region103: #{classifier_transformer_forward.1} parent=1 // pred_check_branch
      %1853 = sbr.rel (0) target = $region105
    $region104: #{classifier_transformer_forward.1} parent=1 // pred_region
      _
    $region105: #{classifier_transformer_forward.1} parent=1 // pred_fallthru
      _
    // Predicated region
    $region106: #{classifier_transformer_forward.1} parent=1 // pred_check
      _
    $region107: #{classifier_transformer_forward.1} parent=1 // pred_check_branch
      %1855 = sbr.rel (0) target = $region109
    $region108: #{classifier_transformer_forward.1} parent=1 // pred_region
      _
    $region109: #{classifier_transformer_forward.1} parent=1 // pred_fallthru
      _
    %1856 = vsyncpa [#allocation5], 1
    %1857 = vsyncpa [#allocation7], 1
    %1858 = vsyncpa [#allocation10], 1
    %1859 = vsyncpa [#allocation13], 1

</llo_original>
